<compile_context>
chip_gen: v6e
topology: v6e:2x2x1
jax: 0.10.0
libtpu: 0.0.40
codegen_flags: <defaults>
</compile_context>

<pallas_src>
import functools

import jax
import jax.numpy as jnp
from jax.experimental import pallas as pl
from jax.experimental.pallas import tpu as pltpu


def _round_up(x, m):
    return ((x + m - 1) // m) * m


def _velocity_kernel(x_ref, cond_ref, w1_ref, wc_ref, b1_ref, w2_ref, b2_ref,
                     o_ref):
    """Per (batch-tile, out-D-tile) step: MLP with f32 accumulation."""
    # f32 inputs are cast to bf16 on the VPU right before the MXU; this keeps
    # x's HBM traffic at 4 B/elem (no separate bf16 copy in the wrapper).
    x_bf = x_ref[...].astype(jnp.bfloat16)
    c_bf = cond_ref[...].astype(jnp.bfloat16)

    h = jnp.dot(x_bf, w1_ref[...], preferred_element_type=jnp.float32)
    h = h + jnp.dot(c_bf, wc_ref[...], preferred_element_type=jnp.float32)
    h = h + b1_ref[...]                       # (1, HID) f32 bias broadcast

    # tanh GELU -> EUP (its own VLIW slot; erf would expand to VALU polys).
    h = jax.nn.gelu(h, approximate=True)

    # Output projection for this output-D tile (bf16 LHS feed, f32 accumulate).
    v = jnp.dot(h.astype(jnp.bfloat16), w2_ref[...],
                preferred_element_type=jnp.float32)
    v = v + b2_ref[...]                       # (1, tn) f32 bias broadcast
    o_ref[...] = v.astype(o_ref.dtype)        # bf16 writeback


def _sinusoidal_time_embedding(t, dim):
    """t: [B] float -> [B, dim] sinusoidal embedding (glue, plain JAX)."""
    half = dim // 2
    freqs = jnp.exp(-jnp.log(10000.0) * jnp.arange(half, dtype=jnp.float32) / half)
    ang = t[:, None].astype(jnp.float32) * freqs[None, :]
    return jnp.concatenate([jnp.sin(ang), jnp.cos(ang)], axis=-1)   # [B, dim]


def _pick_batch_tile(B, D):
    """Batch tile: as fat as VMEM allows (<=512), minimal padding, mult of 16."""
    # Per-step batch-tiled streams: x f32 (4 B) + out bf16 (2 B), each
    # double-buffered -> 12 * tb * D bytes.  Budget ~24 MiB for them.
    budget = 24 * 1024 * 1024
    cap = max(16, (budget // (12 * max(D, 1))) // 16 * 16)
    tb_max = min(512, cap)
    if B <= tb_max:
        return _round_up(max(B, 1), 16)
    n_steps = -(-B // tb_max)                      # ceil
    return _round_up(-(-B // n_steps), 16)         # tightest tile, mult of 16


class VelocityFieldPallas:
    """JAX/Pallas equivalent of VelocityField wrapping a synthetic MLP model."""
    # TODO(synk): the PyTorch module only forwards to an arbitrary `model`; the
    # wrapped model here is a synthetic time/latent-conditioned MLP.

    def __init__(self, C, H, W, latent_dim=32, hidden=256, t_emb_dim=64, seed=0):
        self.C, self.H, self.W = C, H, W
        D = C * H * W
        self.D = D
        self.latent_dim = latent_dim
        self.hidden = hidden
        self.t_emb_dim = t_emb_dim
        # Conditioning lanes padded to a multiple of 128 (single MXU K tile).
        self.cond_dim = _round_up(t_emb_dim + latent_dim, 128)

        key = jax.random.PRNGKey(seed)
        k1, k2, k3, k4 = jax.random.split(key, 4)
        s = lambda fan_in: 1.0 / jnp.sqrt(jnp.float32(fan_in))
        W1 = jax.random.normal(k1, (D, hidden), jnp.float32) * s(D)
        Wt = jax.random.normal(k2, (t_emb_dim, hidden), jnp.float32) * s(t_emb_dim)
        Wl = jax.random.normal(k3, (latent_dim, hidden), jnp.float32) * s(latent_dim)
        W2 = jax.random.normal(k4, (hidden, D), jnp.float32) * s(hidden)

        # Stack Wt / Wl (zero-padded) into one [cond_dim, hidden] weight.
        Wc = jnp.zeros((self.cond_dim, hidden), jnp.float32)
        Wc = Wc.at[:t_emb_dim].set(Wt)
        Wc = Wc.at[t_emb_dim:t_emb_dim + latent_dim].set(Wl)

        # bf16 weights (MXU-native, half the HBM traffic); f32 biases.
        self.W1 = W1.astype(jnp.bfloat16)
        self.Wc = Wc.astype(jnp.bfloat16)
        self.W2 = W2.astype(jnp.bfloat16)
        self.b1 = jnp.zeros((1, hidden), jnp.float32)
        self.b2 = jnp.zeros((1, D), jnp.float32)

    # ---------------------------------------------------------------- helpers
    def _make_cond(self, t, latents):
        B = t.shape[0]
        temb = _sinusoidal_time_embedding(t, self.t_emb_dim)
        pad = self.cond_dim - self.t_emb_dim - self.latent_dim
        cond = jnp.concatenate(
            [temb, latents.astype(jnp.float32),
             jnp.zeros((B, pad), jnp.float32)], axis=-1)
        return cond                                    # stays f32; kernel casts

    # ----------------------------------------------------------------- kernel
    @functools.partial(jax.jit, static_argnums=0)
    def _call_kernel(self, x_flat, cond):
        B, D = x_flat.shape
        hid = self.hidden
        cd = self.cond_dim

        tb = _pick_batch_tile(B, D)
        B_pad = _round_up(B, tb)
        if B_pad != B:
            # Only the short last tile is padded (tiny copy for small B).
            x_flat = jnp.pad(x_flat, ((0, B_pad - B), (0, 0)))
            cond = jnp.pad(cond, ((0, B_pad - B), (0, 0)))
        grid_b = B_pad // tb

        # With a single batch tile (small-batch inference) split the output
        # projection over D so both TensorCores (v7x) get work; h is cheap to
        # recompute.  For larger batches keep the full D per step.
        if grid_b == 1 and D % 256 == 0:
            tn = D // 2
        else:
            tn = D
        grid_d = D // tn
        grid = (grid_b, grid_d)

        out = pl.pallas_call(
            _velocity_kernel,
            out_shape=jax.ShapeDtypeStruct((B_pad, D), jnp.bfloat16),
            grid_spec=pltpu.PrefetchScalarGridSpec(
                num_scalar_prefetch=0,
                grid=grid,
                in_specs=[
                    pl.BlockSpec((tb, D), lambda i, j: (i, 0)),    # x tile (f32)
                    pl.BlockSpec((tb, cd), lambda i, j: (i, 0)),   # cond tile
                    pl.BlockSpec((D, hid), lambda i, j: (0, 0)),   # W1 (resident)
                    pl.BlockSpec((cd, hid), lambda i, j: (0, 0)),  # Wc (resident)
                    pl.BlockSpec((1, hid), lambda i, j: (0, 0)),   # b1
                    pl.BlockSpec((hid, tn), lambda i, j: (0, j)),  # W2 out-tile
                    pl.BlockSpec((1, tn), lambda i, j: (0, j)),    # b2 out-tile
                ],
                out_specs=pl.BlockSpec((tb, tn), lambda i, j: (i, j)),
            ),
            compiler_params=pltpu.CompilerParams(
                dimension_semantics=("parallel", "parallel"),
                vmem_limit_bytes=48 * 1024 * 1024,
            ),
        )(x_flat, cond, self.W1, self.Wc, self.b1, self.W2, self.b2)
        return out[:B]

    # ---------------------------------------------------------------- forward
    def forward(self, x, t, latents=None):
        # x: [B, C, H, W] NCHW, t: [B], latents: [B, latent_dim] or None
        B = x.shape[0]
        if latents is None:
            latents = jnp.zeros((B, self.latent_dim), jnp.float32)
        x_flat = x.reshape(B, self.D)                  # f32, no wrapper cast
        cond = self._make_cond(t, latents)
        v = self._call_kernel(x_flat, cond)            # bf16 output
        return v.reshape(B, self.C, self.H, self.W)

    # pure-JAX reference (same precision policy, f32 output) for verification
    def forward_ref(self, x, t, latents=None):
        B = x.shape[0]
        if latents is None:
            latents = jnp.zeros((B, self.latent_dim), jnp.float32)
        x_flat = x.reshape(B, self.D).astype(jnp.bfloat16)
        cond = self._make_cond(t, latents).astype(jnp.bfloat16)
        h = jnp.dot(x_flat, self.W1, preferred_element_type=jnp.float32)
        h = h + jnp.dot(cond, self.Wc, preferred_element_type=jnp.float32)
        h = h + self.b1
        h = jax.nn.gelu(h, approximate=True)
        v = jnp.dot(h.astype(jnp.bfloat16), self.W2,
                    preferred_element_type=jnp.float32)
        v = v + self.b2
        return v.reshape(B, self.C, self.H, self.W)


if __name__ == "__main__":
    B, C, H, W = 2, 4, 16, 16
    latent_dim = 32

    key = jax.random.PRNGKey(0)
    kx, kt, kl = jax.random.split(key, 3)
    x = jax.random.normal(kx, (B, C, H, W), jnp.float32)
    t = jax.random.uniform(kt, (B,), jnp.float32)
    latents = jax.random.normal(kl, (B, latent_dim), jnp.float32)

    vf = VelocityFieldPallas(C, H, W, latent_dim=latent_dim, hidden=256,
                             t_emb_dim=64, seed=0)

    out = vf.forward(x, t, latents=latents)
    out = jax.block_until_ready(out)

    ref = vf.forward_ref(x, t, latents=latents)
    assert out.shape == (B, C, H, W)
    # bf16 weights / LHS feeds / bf16 output + tanh GELU -> loose tolerance.
    assert jnp.allclose(out.astype(jnp.float32), ref.astype(jnp.float32),
                        atol=3e-2, rtol=3e-2)

    print("KERNEL_OK")
</pallas_src>

<mosaic_0001>
module attributes {stable_mosaic.version = 11 : i64} {
  func.func @_velocity_kernel(%arg0: i32, %arg1: i32, %arg2: memref<16x1024xf32, #tpu.memory_space<vmem>>, %arg3: memref<16x128xf32, #tpu.memory_space<vmem>>, %arg4: memref<1024x256xbf16, #tpu.memory_space<vmem>>, %arg5: memref<128x256xbf16, #tpu.memory_space<vmem>>, %arg6: memref<1x256xf32, #tpu.memory_space<vmem>>, %arg7: memref<256x512xbf16, #tpu.memory_space<vmem>>, %arg8: memref<1x512xf32, #tpu.memory_space<vmem>>, %arg9: memref<16x512xbf16, #tpu.memory_space<vmem>>) attributes {dimension_semantics = [#tpu.dimension_semantics<parallel>, #tpu.dimension_semantics<parallel>], iteration_bounds = array<i64: 1, 2>, scalar_prefetch = 0 : i64, scratch_operands = 0 : i64, tpu.core_type = #tpu.core_type<tc>, window_params = [{transform_indices = @transform_0, window_bounds = array<i64: 16, 1024>}, {transform_indices = @transform_1, window_bounds = array<i64: 16, 128>}, {pipeline_mode = #tpu.pipeline_mode<synchronous>, transform_indices = @transform_2, window_bounds = array<i64: 1024, 256>}, {pipeline_mode = #tpu.pipeline_mode<synchronous>, transform_indices = @transform_3, window_bounds = array<i64: 128, 256>}, {pipeline_mode = #tpu.pipeline_mode<synchronous>, transform_indices = @transform_4, window_bounds = array<i64: 1, 256>}, {transform_indices = @transform_5, window_bounds = array<i64: 256, 512>}, {transform_indices = @transform_6, window_bounds = array<i64: 1, 512>}, {transform_indices = @transform_7, window_bounds = array<i64: 16, 512>}]} {
    %c0 = arith.constant 0 : index
    %c0_0 = arith.constant 0 : index
    %0 = vector.load %arg2[%c0, %c0_0] : memref<16x1024xf32, #tpu.memory_space<vmem>>, vector<16x1024xf32>
    %1 = arith.truncf %0 : vector<16x1024xf32> to vector<16x1024xbf16>
    %c0_1 = arith.constant 0 : index
    %c0_2 = arith.constant 0 : index
    %2 = vector.load %arg3[%c0_1, %c0_2] : memref<16x128xf32, #tpu.memory_space<vmem>>, vector<16x128xf32>
    %3 = arith.truncf %2 : vector<16x128xf32> to vector<16x128xbf16>
    %c0_3 = arith.constant 0 : index
    %c0_4 = arith.constant 0 : index
    %4 = vector.load %arg4[%c0_3, %c0_4] : memref<1024x256xbf16, #tpu.memory_space<vmem>>, vector<1024x256xbf16>
    %cst = arith.constant dense<0.000000e+00> : vector<16x256xf32>
    %5 = tpu.matmul %1, %4, %cst {dimension_numbers = #tpu.dot_dimension_numbers<[1], [0], [0], [1], [0, 0, 1, 1], [], []>} : vector<16x1024xbf16>, vector<1024x256xbf16>, vector<16x256xf32> -> vector<16x256xf32>
    %c0_5 = arith.constant 0 : index
    %c0_6 = arith.constant 0 : index
    %6 = vector.load %arg5[%c0_5, %c0_6] : memref<128x256xbf16, #tpu.memory_space<vmem>>, vector<128x256xbf16>
    %cst_7 = arith.constant dense<0.000000e+00> : vector<16x256xf32>
    %7 = tpu.matmul %3, %6, %cst_7 {dimension_numbers = #tpu.dot_dimension_numbers<[1], [0], [0], [1], [0, 0, 1, 1], [], []>} : vector<16x128xbf16>, vector<128x256xbf16>, vector<16x256xf32> -> vector<16x256xf32>
    %8 = arith.addf %5, %7 : vector<16x256xf32>
    %c0_8 = arith.constant 0 : index
    %c0_9 = arith.constant 0 : index
    %9 = vector.load %arg6[%c0_8, %c0_9] : memref<1x256xf32, #tpu.memory_space<vmem>>, vector<1x256xf32>
    %10 = vector.broadcast %9 : vector<1x256xf32> to vector<16x256xf32>
    %11 = arith.addf %8, %10 : vector<16x256xf32>
    %12 = arith.mulf %11, %11 : vector<16x256xf32>
    %13 = arith.mulf %11, %12 : vector<16x256xf32>
    %cst_10 = arith.constant 4.471500e-02 : f32
    %14 = vector.broadcast %cst_10 : f32 to vector<16x256xf32>
    %15 = arith.mulf %14, %13 : vector<16x256xf32>
    %16 = arith.addf %11, %15 : vector<16x256xf32>
    %cst_11 = arith.constant 0.797884583 : f32
    %17 = vector.broadcast %cst_11 : f32 to vector<16x256xf32>
    %18 = arith.mulf %17, %16 : vector<16x256xf32>
    %19 = math.tanh %18 : vector<16x256xf32>
    %cst_12 = arith.constant 1.000000e+00 : f32
    %20 = vector.broadcast %cst_12 : f32 to vector<16x256xf32>
    %21 = arith.addf %20, %19 : vector<16x256xf32>
    %cst_13 = arith.constant 5.000000e-01 : f32
    %22 = vector.broadcast %cst_13 : f32 to vector<16x256xf32>
    %23 = arith.mulf %22, %21 : vector<16x256xf32>
    %24 = arith.mulf %11, %23 : vector<16x256xf32>
    %25 = arith.truncf %24 : vector<16x256xf32> to vector<16x256xbf16>
    %c0_14 = arith.constant 0 : index
    %c0_15 = arith.constant 0 : index
    %26 = vector.load %arg7[%c0_14, %c0_15] : memref<256x512xbf16, #tpu.memory_space<vmem>>, vector<256x512xbf16>
    %cst_16 = arith.constant dense<0.000000e+00> : vector<16x512xf32>
    %27 = tpu.matmul %25, %26, %cst_16 {dimension_numbers = #tpu.dot_dimension_numbers<[1], [0], [0], [1], [0, 0, 1, 1], [], []>} : vector<16x256xbf16>, vector<256x512xbf16>, vector<16x512xf32> -> vector<16x512xf32>
    %c0_17 = arith.constant 0 : index
    %c0_18 = arith.constant 0 : index
    %28 = vector.load %arg8[%c0_17, %c0_18] : memref<1x512xf32, #tpu.memory_space<vmem>>, vector<1x512xf32>
    %29 = vector.broadcast %28 : vector<1x512xf32> to vector<16x512xf32>
    %30 = arith.addf %27, %29 : vector<16x512xf32>
    %31 = arith.truncf %30 : vector<16x512xf32> to vector<16x512xbf16>
    %c0_19 = arith.constant 0 : index
    %c0_20 = arith.constant 0 : index
    %32 = vector.load %arg9[%c0_19, %c0_20] : memref<16x512xbf16, #tpu.memory_space<vmem>>, vector<16x512xbf16>
    tpu.vector_store %arg9[%c0_19, %c0_20], %31 {strides = array<i32>} : memref<16x512xbf16, #tpu.memory_space<vmem>>, vector<16x512xbf16>,
    return
  }
  func.func @transform_0(%arg0: i32, %arg1: i32) -> (i32, i32) {
    %c0_i32 = arith.constant 0 : i32
    %c0_i32_0 = arith.constant 0 : i32
    return %arg0, %c0_i32 : i32, i32
  }
  func.func @transform_1(%arg0: i32, %arg1: i32) -> (i32, i32) {
    %c0_i32 = arith.constant 0 : i32
    %c0_i32_0 = arith.constant 0 : i32
    return %arg0, %c0_i32 : i32, i32
  }
  func.func @transform_2(%arg0: i32, %arg1: i32) -> (i32, i32) {
    %c0_i32 = arith.constant 0 : i32
    %c0_i32_0 = arith.constant 0 : i32
    %c0_i32_1 = arith.constant 0 : i32
    return %c0_i32, %c0_i32_0 : i32, i32
  }
  func.func @transform_3(%arg0: i32, %arg1: i32) -> (i32, i32) {
    %c0_i32 = arith.constant 0 : i32
    %c0_i32_0 = arith.constant 0 : i32
    %c0_i32_1 = arith.constant 0 : i32
    return %c0_i32, %c0_i32_0 : i32, i32
  }
  func.func @transform_4(%arg0: i32, %arg1: i32) -> (i32, i32) {
    %c0_i32 = arith.constant 0 : i32
    %c0_i32_0 = arith.constant 0 : i32
    %c0_i32_1 = arith.constant 0 : i32
    return %c0_i32, %c0_i32_0 : i32, i32
  }
  func.func @transform_5(%arg0: i32, %arg1: i32) -> (i32, i32) {
    %c0_i32 = arith.constant 0 : i32
    %c0_i32_0 = arith.constant 0 : i32
    return %c0_i32, %arg1 : i32, i32
  }
  func.func @transform_6(%arg0: i32, %arg1: i32) -> (i32, i32) {
    %c0_i32 = arith.constant 0 : i32
    %c0_i32_0 = arith.constant 0 : i32
    return %c0_i32, %arg1 : i32, i32
  }
  func.func @transform_7(%arg0: i32, %arg1: i32) -> (i32, i32) {
    %c0_i32 = arith.constant 0 : i32
    return %arg0, %arg1 : i32, i32
  }
}

</mosaic_0001>

<llo_original>
// kernel: _call_kernel.1
$region0: #{_call_kernel.1}
  #allocation0 [shape = 'u32[]', space=smem, size = 0x4, offset = 0x4, fixed_abs, tag = 'smem constant byte address 0x4 - core index']
  #allocation1 [shape = 'u32[144,128]{1,0:T(1,128)}', space=vmem, size = 0x12000, scoped, tag = 'internal scratch']
  %s0 = inlined_call_operand.vmem [shape: f32[16,1024], index: 0, kind: input, shape index: {}]
  %s1 = inlined_call_operand.vmem [shape: f32[16,128], index: 1, kind: input, shape index: {}]
  %s2 = inlined_call_operand.hbm [shape: bf16[1024,256], index: 2, kind: input, shape index: {}]
  %s3 = inlined_call_operand.vmem [shape: bf16[128,256], index: 3, kind: input, shape index: {}]
  %s4 = inlined_call_operand.vmem [shape: f32[1,256], index: 4, kind: input, shape index: {}]
  %s5 = inlined_call_operand.hbm [shape: bf16[256,1024], index: 5, kind: input, shape index: {}]
  %s6 = inlined_call_operand.vmem [shape: f32[1,1024], index: 6, kind: input, shape index: {}]
  %s7 = inlined_call_operand.vmem [shape: bf16[16,1024], index: 7, kind: output, shape index: {}]
  %s8 = sld [smem:[#allocation0]]
  $region88: #{_call_kernel.1} parent=0
    _
  %s10 = ssub.s32 1, %s8
  %s11 = scalar_select 0, %s10, %s8
  $region1: #{_call_kernel.1} parent=0
    #allocation2 [shape = 'u8[524288]{0}', space=vmem, size = 0x80000, scoped, tag = 'input window, operand 2, single buffered']
    #allocation3 [shape = 's32[2]{0}', space=sflag, size = 0x8, scoped, tag = 'scoped memory for _call_kernel.1']
    #allocation4 [shape = 'u8[524288]{0}', space=vmem, size = 0x80000, scoped, tag = 'input window, operand 5']
    #allocation5 [shape = 's32[2]{0}', space=sflag, size = 0x8, scoped, tag = 'scoped memory for _call_kernel.1']
    #allocation6 [shape = 'u8[32768]{0}', space=vmem, size = 0x8000, scoped, tag = 'output window, operand 0']
    %12 = vsyncpa [#allocation3], 0
    %13 = vsyncpa [#allocation5], 0
    %s14 = scalar_lea.sflag [#allocation5], 1
    %15 = vsyncpa %s14, 0
    loop: start=0, step=1, limit=4
    $region2: #{_call_kernel.1} parent=1 // loop_pre_header
      _
    $region3: #{_call_kernel.1} parent=1 // loop_header
      %s17 = sphi 0, %s21
      %p18 = scmp.ge.s32.totalorder %s17, 4
      %s24 = sphi 0, %s36
      %s25 = sphi 0, %s32
      %s26 = sphi 0, %s24
      %s27 = sphi 0, %s25
      %s28 = sphi 0, %s26
      %s29 = sphi 0, %s27
      %s39 = sphi 0, %s41
      %s42 = sphi 0, %s39
      %s43 = sphi 0, %s42
      %s59 = sphi 0, %s43
      %s65 = sphi 0, %s67
      %s68 = sphi 0, %s65
      %s69 = sphi 0, %s68
      %s85 = sphi 0, %s69
      %s89 = sphi 0, %s89
      %s91 = sphi 0, %s89
      %s92 = sphi 0, %s91
      %s106 = sphi 0, %s92
      %s110 = sphi 0, %s110
      %s112 = sphi 0, %s110
      %s113 = sphi 0, %s112
      %s127 = sphi 0, %s113
      %s131 = sphi 0, %s131
      %s133 = sphi 0, %s131
      %s134 = sphi 0, %s133
      %s148 = sphi 0, %s134
      %s154 = sphi 0, %s156
      %s157 = sphi 0, %s154
      %s158 = sphi 0, %s157
      %s174 = sphi 0, %s158
      %s180 = sphi 0, %s182
      %s183 = sphi 0, %s180
      %s184 = sphi 0, %s183
      %s200 = sphi 0, %s184
      %s208 = sphi 0, %s210
      %s211 = sphi 0, %s208
      %s212 = sphi 0, %s211
      %s228 = sphi 0, %s212
    $region4: #{_call_kernel.1} parent=1 // loop_header_branch
      %20 = sbr.rel (%p18) target = $region8
    $region5: #{_call_kernel.1} parent=1 // loop_body
      %s22 = ssub.s32 %s17, 1
      %s23 = ssub.s32 %s17, 2
      %s30 = sadd.s32 1, %s25
      %p31 = scmp.ge.s32.totalorder %s30, 2
      %s32 = scalar_select %p31, 0, %s30
      %s33 = sadd.s32 1, %s24
      %s34 = scalar_select %p31, %s33, %s24
      %p35 = scmp.ge.s32.totalorder %s34, 1
      %s36 = scalar_select %p35, 0, %s34
      %s37 = ssub.s32 %s24, %s36
      %p38 = scmp.eq.s32.totalorder %s37, 0
      %s40 = sadd.s32 %s39, 1
      %s41 = scalar_select %p38, %s39, %s40
      %p44 = pneg %p38
      %p45 = scmp.eq.s32.totalorder %s17, 1
      %p46 = por %p44, %p45
      %p47 = scmp.ne.s32.totalorder %s39, %s42
      %p48 = scmp.eq.s32.totalorder %s17, 0
      %p49 = por %p47, %p48
      %p50 = scmp.ne.s32.totalorder %s39, %s42
      %p51 = scmp.eq.s32.totalorder %s22, 1
      %p52 = por %p50, %p51
      %p53 = scmp.ne.s32.totalorder %s42, %s43
      %p54 = scmp.eq.s32.totalorder %s22, 0
      %p55 = por %p53, %p54
      %p56 = scmp.ne.s32.totalorder %s42, %s43
      %p57 = scmp.eq.s32.totalorder %s23, 1
      %p58 = por %p56, %p57
      %p60 = scmp.ne.s32.totalorder %s43, %s59
      %p61 = scmp.eq.s32.totalorder %s23, 0
      %p62 = por %p60, %p61
      %s63 = ssub.s32 %s24, %s36
      %p64 = scmp.eq.s32.totalorder %s63, 0
      %s66 = sadd.s32 %s65, 1
      %s67 = scalar_select %p64, %s65, %s66
      %p70 = pneg %p64
      %p71 = scmp.eq.s32.totalorder %s17, 1
      %p72 = por %p70, %p71
      %p73 = scmp.ne.s32.totalorder %s65, %s68
      %p74 = scmp.eq.s32.totalorder %s17, 0
      %p75 = por %p73, %p74
      %p76 = scmp.ne.s32.totalorder %s65, %s68
      %p77 = scmp.eq.s32.totalorder %s22, 1
      %p78 = por %p76, %p77
      %p79 = scmp.ne.s32.totalorder %s68, %s69
      %p80 = scmp.eq.s32.totalorder %s22, 0
      %p81 = por %p79, %p80
      %p82 = scmp.ne.s32.totalorder %s68, %s69
      %p83 = scmp.eq.s32.totalorder %s23, 1
      %p84 = por %p82, %p83
      %p86 = scmp.ne.s32.totalorder %s69, %s85
      %p87 = scmp.eq.s32.totalorder %s23, 0
      %p88 = por %p86, %p87
      %s90 = sadd.s32 %s89, 1
      %p93 = scmp.eq.s32.totalorder %s17, 1
      %p94 = scmp.ne.s32.totalorder %s89, %s91
      %p95 = scmp.eq.s32.totalorder %s17, 0
      %p96 = por %p94, %p95
      %p97 = scmp.ne.s32.totalorder %s89, %s91
      %p98 = scmp.eq.s32.totalorder %s22, 1
      %p99 = por %p97, %p98
      %p100 = scmp.ne.s32.totalorder %s91, %s92
      %p101 = scmp.eq.s32.totalorder %s22, 0
      %p102 = por %p100, %p101
      %p103 = scmp.ne.s32.totalorder %s91, %s92
      %p104 = scmp.eq.s32.totalorder %s23, 1
      %p105 = por %p103, %p104
      %p107 = scmp.ne.s32.totalorder %s92, %s106
      %p108 = scmp.eq.s32.totalorder %s23, 0
      %p109 = por %p107, %p108
      %s111 = sadd.s32 %s110, 1
      %p114 = scmp.eq.s32.totalorder %s17, 1
      %p115 = scmp.ne.s32.totalorder %s110, %s112
      %p116 = scmp.eq.s32.totalorder %s17, 0
      %p117 = por %p115, %p116
      %p118 = scmp.ne.s32.totalorder %s110, %s112
      %p119 = scmp.eq.s32.totalorder %s22, 1
      %p120 = por %p118, %p119
      %p121 = scmp.ne.s32.totalorder %s112, %s113
      %p122 = scmp.eq.s32.totalorder %s22, 0
      %p123 = por %p121, %p122
      %p124 = scmp.ne.s32.totalorder %s112, %s113
      %p125 = scmp.eq.s32.totalorder %s23, 1
      %p126 = por %p124, %p125
      %p128 = scmp.ne.s32.totalorder %s113, %s127
      %p129 = scmp.eq.s32.totalorder %s23, 0
      %p130 = por %p128, %p129
      %s132 = sadd.s32 %s131, 1
      %p135 = scmp.eq.s32.totalorder %s17, 1
      %p136 = scmp.ne.s32.totalorder %s131, %s133
      %p137 = scmp.eq.s32.totalorder %s17, 0
      %p138 = por %p136, %p137
      %p139 = scmp.ne.s32.totalorder %s131, %s133
      %p140 = scmp.eq.s32.totalorder %s22, 1
      %p141 = por %p139, %p140
      %p142 = scmp.ne.s32.totalorder %s133, %s134
      %p143 = scmp.eq.s32.totalorder %s22, 0
      %p144 = por %p142, %p143
      %p145 = scmp.ne.s32.totalorder %s133, %s134
      %p146 = scmp.eq.s32.totalorder %s23, 1
      %p147 = por %p145, %p146
      %p149 = scmp.ne.s32.totalorder %s134, %s148
      %p150 = scmp.eq.s32.totalorder %s23, 0
      %p151 = por %p149, %p150
      %s152 = ssub.s32 %s25, %s32
      %p153 = scmp.eq.s32.totalorder %s152, 0
      %s155 = sadd.s32 %s154, 1
      %s156 = scalar_select %p153, %s154, %s155
      %p159 = pneg %p153
      %p160 = scmp.eq.s32.totalorder %s17, 1
      %p161 = por %p159, %p160
      %p162 = scmp.ne.s32.totalorder %s154, %s157
      %p163 = scmp.eq.s32.totalorder %s17, 0
      %p164 = por %p162, %p163
      %p165 = scmp.ne.s32.totalorder %s154, %s157
      %p166 = scmp.eq.s32.totalorder %s22, 1
      %p167 = por %p165, %p166
      %p168 = scmp.ne.s32.totalorder %s157, %s158
      %p169 = scmp.eq.s32.totalorder %s22, 0
      %p170 = por %p168, %p169
      %p171 = scmp.ne.s32.totalorder %s157, %s158
      %p172 = scmp.eq.s32.totalorder %s23, 1
      %p173 = por %p171, %p172
      %p175 = scmp.ne.s32.totalorder %s158, %s174
      %p176 = scmp.eq.s32.totalorder %s23, 0
      %p177 = por %p175, %p176
      %s178 = ssub.s32 %s25, %s32
      %p179 = scmp.eq.s32.totalorder %s178, 0
      %s181 = sadd.s32 %s180, 1
      %s182 = scalar_select %p179, %s180, %s181
      %p185 = pneg %p179
      %p186 = scmp.eq.s32.totalorder %s17, 1
      %p187 = por %p185, %p186
      %p188 = scmp.ne.s32.totalorder %s180, %s183
      %p189 = scmp.eq.s32.totalorder %s17, 0
      %p190 = por %p188, %p189
      %p191 = scmp.ne.s32.totalorder %s180, %s183
      %p192 = scmp.eq.s32.totalorder %s22, 1
      %p193 = por %p191, %p192
      %p194 = scmp.ne.s32.totalorder %s183, %s184
      %p195 = scmp.eq.s32.totalorder %s22, 0
      %p196 = por %p194, %p195
      %p197 = scmp.ne.s32.totalorder %s183, %s184
      %p198 = scmp.eq.s32.totalorder %s23, 1
      %p199 = por %p197, %p198
      %p201 = scmp.ne.s32.totalorder %s184, %s200
      %p202 = scmp.eq.s32.totalorder %s23, 0
      %p203 = por %p201, %p202
      %s204 = ssub.s32 %s24, %s36
      %s205 = ssub.s32 %s25, %s32
      %s206 = sor.u32 %s204, %s205
      %p207 = scmp.eq.s32.totalorder %s206, 0
      %s209 = sadd.s32 %s208, 1
      %s210 = scalar_select %p207, %s208, %s209
      %p213 = pneg %p207
      %p214 = scmp.eq.s32.totalorder %s17, 1
      %p215 = por %p213, %p214
      %p216 = scmp.ne.s32.totalorder %s208, %s211
      %p217 = scmp.eq.s32.totalorder %s17, 0
      %p218 = por %p216, %p217
      %p219 = scmp.ne.s32.totalorder %s208, %s211
      %p220 = scmp.eq.s32.totalorder %s22, 1
      %p221 = por %p219, %p220
      %p222 = scmp.ne.s32.totalorder %s211, %s212
      %p223 = scmp.eq.s32.totalorder %s22, 0
      %p224 = por %p222, %p223
      %p225 = scmp.ne.s32.totalorder %s211, %s212
      %p226 = scmp.eq.s32.totalorder %s23, 1
      %p227 = por %p225, %p226
      %p229 = scmp.ne.s32.totalorder %s212, %s228
      %p230 = scmp.eq.s32.totalorder %s23, 0
      %p231 = por %p229, %p230
      %p232 = scmp.le.s32.totalorder 1, %s17
      %p233 = scmp.lt.s32.totalorder %s17, 3
      %p234 = pnand %p232, %p233
      %p235 = pneg %p234
      // Predicated region
      $region9: #{_call_kernel.1} parent=5 // pred_check
        _
      $region10: #{_call_kernel.1} parent=5 // pred_check_branch
        %237 = sbr.rel (%p234) target = $region12
      $region11: #{_call_kernel.1} parent=5 // pred_region
        %s238 = ssub.s32 %s17, 1
        // Predicated region
        $region13: #{_call_kernel.1} parent=11 // pred_check
          %p239 = pneg %p55
        $region14: #{_call_kernel.1} parent=11 // pred_check_branch
          %241 = sbr.rel (%p239) target = $region16
        $region15: #{_call_kernel.1} parent=11 // pred_region
          %s242 = smul.u32 2, %s26
          %p243 = scmp.lt.s32.totalorder %s242, 1
          %s244 = scalar_select %p243, %s242, 1
          %s245 = smul.addr %s244, 8
          %s246 = smul.addr %s245, 8
          %s247 = scalar_lea.vmem %s0, %s246
          %s248 = smul.u32 2, %s26
        $region16: #{_call_kernel.1} parent=11 // pred_fallthru
          _
        // Predicated region
        $region17: #{_call_kernel.1} parent=11 // pred_check
          %p249 = pneg %p81
        $region18: #{_call_kernel.1} parent=11 // pred_check_branch
          %251 = sbr.rel (%p249) target = $region20
        $region19: #{_call_kernel.1} parent=11 // pred_region
          %s252 = smul.u32 2, %s26
          %p253 = scmp.lt.s32.totalorder %s252, 1
          %s254 = scalar_select %p253, %s252, 1
          %s255 = smul.addr %s254, 8
          %s256 = scalar_lea.vmem %s1, %s255
          %s257 = smul.u32 2, %s26
        $region20: #{_call_kernel.1} parent=11 // pred_fallthru
          _
        // Predicated region
        $region21: #{_call_kernel.1} parent=11 // pred_check
          %p258 = pneg %p102
        $region22: #{_call_kernel.1} parent=11 // pred_check_branch
          %260 = sbr.rel (%p258) target = $region24
        $region23: #{_call_kernel.1} parent=11 // pred_region
          %s262 = ssub.s32 16384, 16384
          %263 = vsyncadd [#allocation3], %s262
          %s264 = sshll.u32 [#allocation2], 4
          %s265 = int_to_ptr.vmem [resolvable:$true] %s264
          %270 = dma.hbm_to_vmem [thread:$0]  %s2, 16384, %s265, [#allocation3], 128, 128, 8
        $region24: #{_call_kernel.1} parent=11 // pred_fallthru
          _
        // Predicated region
        $region25: #{_call_kernel.1} parent=11 // pred_check
          %p271 = pneg %p123
        $region26: #{_call_kernel.1} parent=11 // pred_check_branch
          %273 = sbr.rel (%p271) target = $region28
        $region27: #{_call_kernel.1} parent=11 // pred_region
          _
        $region28: #{_call_kernel.1} parent=11 // pred_fallthru
          _
        // Predicated region
        $region29: #{_call_kernel.1} parent=11 // pred_check
          %p274 = pneg %p144
        $region30: #{_call_kernel.1} parent=11 // pred_check_branch
          %276 = sbr.rel (%p274) target = $region32
        $region31: #{_call_kernel.1} parent=11 // pred_region
          _
        $region32: #{_call_kernel.1} parent=11 // pred_fallthru
          _
      $region12: #{_call_kernel.1} parent=5 // pred_fallthru
        _
      %p277 = scmp.lt.s32.totalorder %s17, 2
      // Predicated region
      $region33: #{_call_kernel.1} parent=5 // pred_check
        %p278 = pneg %p277
      $region34: #{_call_kernel.1} parent=5 // pred_check_branch
        %280 = sbr.rel (%p278) target = $region36
      $region35: #{_call_kernel.1} parent=5 // pred_region
        // Predicated region
        $region37: #{_call_kernel.1} parent=35 // pred_check
          %p281 = pneg %p164
        $region38: #{_call_kernel.1} parent=35 // pred_check_branch
          %283 = sbr.rel (%p281) target = $region40
        $region39: #{_call_kernel.1} parent=35 // pred_region
          %s284 = sand.u32 %s154, 1
          %s285 = scalar_lea.sflag [#allocation5], %s284
          %s286 = sand.u32 %s154, 1
          %s287 = smul.addr %s286, 512
          %s288 = scalar_lea.vmem [#allocation4], %s287
          %s289 = smul.u32 4, %s25
          %s291 = ssub.s32 8192, 8192
          %292 = vsyncadd %s285, %s291
          %s293 = smul.addr %s289, 64
          %s294 = scalar_lea.hbm %s5, %s293
          %s295 = sshll.u32 %s288, 4
          %s296 = int_to_ptr.vmem [resolvable:$true] %s295
          %301 = dma.hbm_to_vmem [thread:$0]  %s294, 8192, %s296, %s285, 512, 256, 16
        $region40: #{_call_kernel.1} parent=35 // pred_fallthru
          _
        // Predicated region
        $region41: #{_call_kernel.1} parent=35 // pred_check
          %p302 = pneg %p190
        $region42: #{_call_kernel.1} parent=35 // pred_check_branch
          %304 = sbr.rel (%p302) target = $region44
        $region43: #{_call_kernel.1} parent=35 // pred_region
          %s305 = smul.u32 4, %s25
          %p306 = scmp.lt.s32.totalorder %s305, 7
          %s307 = scalar_select %p306, %s305, 7
          %s308 = scalar_lea.vmem %s6, %s307
          %s309 = smul.u32 4, %s25
        $region44: #{_call_kernel.1} parent=35 // pred_fallthru
          _
      $region36: #{_call_kernel.1} parent=5 // pred_fallthru
        _
      %p310 = scmp.le.s32.totalorder 1, %s17
      %p311 = scmp.lt.s32.totalorder %s17, 3
      %p312 = pnand %p310, %p311
      %p313 = pneg %p312
      // Predicated region
      $region45: #{_call_kernel.1} parent=5 // pred_check
        _
      $region46: #{_call_kernel.1} parent=5 // pred_check_branch
        %315 = sbr.rel (%p312) target = $region48
      $region47: #{_call_kernel.1} parent=5 // pred_region
        %s316 = ssub.s32 %s17, 1
        // Predicated region
        $region49: #{_call_kernel.1} parent=47 // pred_check
          %p317 = pneg %p102
        $region50: #{_call_kernel.1} parent=47 // pred_check_branch
          %319 = sbr.rel (%p317) target = $region52
        $region51: #{_call_kernel.1} parent=47 // pred_region
          %320 = dma.done [#allocation3], 16384
        $region52: #{_call_kernel.1} parent=47 // pred_fallthru
          _
        %s321 = sand.u32 %s157, 1
        %s322 = scalar_lea.sflag [#allocation5], %s321
        %s323 = sand.u32 %s157, 1
        %s324 = smul.addr %s323, 512
        %s325 = scalar_lea.vmem [#allocation4], %s324
        // Predicated region
        $region53: #{_call_kernel.1} parent=47 // pred_check
          %p326 = pneg %p170
        $region54: #{_call_kernel.1} parent=47 // pred_check_branch
          %328 = sbr.rel (%p326) target = $region56
        $region55: #{_call_kernel.1} parent=47 // pred_region
          %329 = dma.done %s322, 8192
        $region56: #{_call_kernel.1} parent=47 // pred_fallthru
          _
        %s330 = smul.u32 2, %s26
        %p331 = scmp.lt.s32.totalorder %s330, 1
        %s332 = scalar_select %p331, %s330, 1
        %s333 = smul.addr %s332, 8
        %s334 = smul.addr %s333, 8
        %s335 = scalar_lea.vmem %s0, %s334
        %p336 = pneg %p55
        %p337 = pneg %p52
        %s338 = smul.u32 2, %s26
        %p339 = scmp.lt.s32.totalorder %s338, 1
        %s340 = scalar_select %p339, %s338, 1
        %s341 = smul.addr %s340, 8
        %s342 = scalar_lea.vmem %s1, %s341
        %p343 = pneg %p81
        %p344 = pneg %p78
        %p345 = pneg %p102
        %p346 = pneg %p99
        %p347 = pneg %p123
        %p348 = pneg %p120
        %p349 = pneg %p144
        %p350 = pneg %p141
        %s351 = sand.u32 %s157, 1
        %s352 = scalar_lea.sflag [#allocation5], %s351
        %s353 = sand.u32 %s157, 1
        %s354 = smul.addr %s353, 512
        %s355 = scalar_lea.vmem [#allocation4], %s354
        %p356 = pneg %p170
        %p357 = pneg %p167
        %s358 = smul.u32 4, %s27
        %p359 = scmp.lt.s32.totalorder %s358, 7
        %s360 = scalar_select %p359, %s358, 7
        %s361 = scalar_lea.vmem %s6, %s360
        %p362 = pneg %p196
        %p363 = pneg %p193
        %p364 = pneg %p224
        %p365 = pneg %p221
        %s366 = sand.u32 %s211, 1
        %s367 = sand.u32 %s211, 1
        %s368 = smul.addr %s367, 32
        %s369 = scalar_lea.vmem [#allocation6], %s368
        %s370 = smul.u32 2, %s26
        %p371 = scmp.lt.s32.totalorder %s370, 1
        %s372 = scalar_select %p371, %s370, 1
        %s373 = smul.addr %s372, 8
        %s374 = smul.addr %s373, 8
        %s375 = scalar_lea.vmem %s0, %s374
        %s376 = smul.u32 2, %s26
        %s377 = smul.u32 2, %s26
        %p378 = scmp.lt.s32.totalorder %s377, 1
        %s379 = scalar_select %p378, %s377, 1
        %s380 = smul.addr %s379, 8
        %s381 = scalar_lea.vmem %s1, %s380
        %s382 = smul.u32 2, %s26
        %s383 = smul.u32 4, %s27
        %s384 = smul.u32 4, %s27
        %p385 = scmp.lt.s32.totalorder %s384, 7
        %s386 = scalar_select %p385, %s384, 7
        %s387 = scalar_lea.vmem %s6, %s386
        %s388 = smul.u32 4, %s27
        %s389 = smul.u32 2, %s26
        %s390 = smul.u32 4, %s27
        %v392 = vld [vmem:[%s375] sm:$0xff]
        %v393 = vld [vmem:[%s375 + $0x8] sm:$0xff]
        %v394 = vld [vmem:[%s375 + $0x10] sm:$0xff]
        %v395 = vld [vmem:[%s375 + $0x18] sm:$0xff]
        %v396 = vld [vmem:[%s375 + $0x20] sm:$0xff]
        %v397 = vld [vmem:[%s375 + $0x28] sm:$0xff]
        %v398 = vld [vmem:[%s375 + $0x30] sm:$0xff]
        %v399 = vld [vmem:[%s375 + $0x38] sm:$0xff]
        %v400 = vld [vmem:[%s375 + $0x40] sm:$0xff]
        %v401 = vld [vmem:[%s375 + $0x48] sm:$0xff]
        %v402 = vld [vmem:[%s375 + $0x50] sm:$0xff]
        %v403 = vld [vmem:[%s375 + $0x58] sm:$0xff]
        %v404 = vld [vmem:[%s375 + $0x60] sm:$0xff]
        %v405 = vld [vmem:[%s375 + $0x68] sm:$0xff]
        %v406 = vld [vmem:[%s375 + $0x70] sm:$0xff]
        %v407 = vld [vmem:[%s375 + $0x78] sm:$0xff]
        %v408 = vpack.c.bf16 %v400, %v392
        %v409 = vpack.c.bf16 %v401, %v393
        %v410 = vpack.c.bf16 %v402, %v394
        %v411 = vpack.c.bf16 %v403, %v395
        %v412 = vpack.c.bf16 %v404, %v396
        %v413 = vpack.c.bf16 %v405, %v397
        %v414 = vpack.c.bf16 %v406, %v398
        %v415 = vpack.c.bf16 %v407, %v399
        %v416 = vld [vmem:[%s381] sm:$0xff]
        %v417 = vld [vmem:[%s381 + $0x8] sm:$0xff]
        %v418 = vpack.c.bf16 %v417, %v416
        %v419 = vld [vmem:[#allocation2] sm:$0xff]
        %v420 = vld [vmem:[#allocation2 + $0x8] sm:$0xff]
        %v421 = vld [vmem:[#allocation2 + $0x10] sm:$0xff]
        %v422 = vld [vmem:[#allocation2 + $0x18] sm:$0xff]
        %v423 = vld [vmem:[#allocation2 + $0x20] sm:$0xff]
        %v424 = vld [vmem:[#allocation2 + $0x28] sm:$0xff]
        %v425 = vld [vmem:[#allocation2 + $0x30] sm:$0xff]
        %v426 = vld [vmem:[#allocation2 + $0x38] sm:$0xff]
        %v427 = vld [vmem:[#allocation2 + $0x40] sm:$0xff]
        %v428 = vld [vmem:[#allocation2 + $0x48] sm:$0xff]
        %v429 = vld [vmem:[#allocation2 + $0x50] sm:$0xff]
        %v430 = vld [vmem:[#allocation2 + $0x58] sm:$0xff]
        %v431 = vld [vmem:[#allocation2 + $0x60] sm:$0xff]
        %v432 = vld [vmem:[#allocation2 + $0x68] sm:$0xff]
        %v433 = vld [vmem:[#allocation2 + $0x70] sm:$0xff]
        %v434 = vld [vmem:[#allocation2 + $0x78] sm:$0xff]
        %v435 = vld [vmem:[#allocation2 + $0x80] sm:$0xff]
        %v436 = vld [vmem:[#allocation2 + $0x88] sm:$0xff]
        %v437 = vld [vmem:[#allocation2 + $0x90] sm:$0xff]
        %v438 = vld [vmem:[#allocation2 + $0x98] sm:$0xff]
        %v439 = vld [vmem:[#allocation2 + $0xa0] sm:$0xff]
        %v440 = vld [vmem:[#allocation2 + $0xa8] sm:$0xff]
        %v441 = vld [vmem:[#allocation2 + $0xb0] sm:$0xff]
        %v442 = vld [vmem:[#allocation2 + $0xb8] sm:$0xff]
        %v443 = vld [vmem:[#allocation2 + $0xc0] sm:$0xff]
        %v444 = vld [vmem:[#allocation2 + $0xc8] sm:$0xff]
        %v445 = vld [vmem:[#allocation2 + $0xd0] sm:$0xff]
        %v446 = vld [vmem:[#allocation2 + $0xd8] sm:$0xff]
        %v447 = vld [vmem:[#allocation2 + $0xe0] sm:$0xff]
        %v448 = vld [vmem:[#allocation2 + $0xe8] sm:$0xff]
        %v449 = vld [vmem:[#allocation2 + $0xf0] sm:$0xff]
        %v450 = vld [vmem:[#allocation2 + $0xf8] sm:$0xff]
        %v451 = vld [vmem:[#allocation2 + $0x100] sm:$0xff]
        %v452 = vld [vmem:[#allocation2 + $0x108] sm:$0xff]
        %v453 = vld [vmem:[#allocation2 + $0x110] sm:$0xff]
        %v454 = vld [vmem:[#allocation2 + $0x118] sm:$0xff]
        %v455 = vld [vmem:[#allocation2 + $0x120] sm:$0xff]
        %v456 = vld [vmem:[#allocation2 + $0x128] sm:$0xff]
        %v457 = vld [vmem:[#allocation2 + $0x130] sm:$0xff]
        %v458 = vld [vmem:[#allocation2 + $0x138] sm:$0xff]
        %v459 = vld [vmem:[#allocation2 + $0x140] sm:$0xff]
        %v460 = vld [vmem:[#allocation2 + $0x148] sm:$0xff]
        %v461 = vld [vmem:[#allocation2 + $0x150] sm:$0xff]
        %v462 = vld [vmem:[#allocation2 + $0x158] sm:$0xff]
        %v463 = vld [vmem:[#allocation2 + $0x160] sm:$0xff]
        %v464 = vld [vmem:[#allocation2 + $0x168] sm:$0xff]
        %v465 = vld [vmem:[#allocation2 + $0x170] sm:$0xff]
        %v466 = vld [vmem:[#allocation2 + $0x178] sm:$0xff]
        %v467 = vld [vmem:[#allocation2 + $0x180] sm:$0xff]
        %v468 = vld [vmem:[#allocation2 + $0x188] sm:$0xff]
        %v469 = vld [vmem:[#allocation2 + $0x190] sm:$0xff]
        %v470 = vld [vmem:[#allocation2 + $0x198] sm:$0xff]
        %v471 = vld [vmem:[#allocation2 + $0x1a0] sm:$0xff]
        %v472 = vld [vmem:[#allocation2 + $0x1a8] sm:$0xff]
        %v473 = vld [vmem:[#allocation2 + $0x1b0] sm:$0xff]
        %v474 = vld [vmem:[#allocation2 + $0x1b8] sm:$0xff]
        %v475 = vld [vmem:[#allocation2 + $0x1c0] sm:$0xff]
        %v476 = vld [vmem:[#allocation2 + $0x1c8] sm:$0xff]
        %v477 = vld [vmem:[#allocation2 + $0x1d0] sm:$0xff]
        %v478 = vld [vmem:[#allocation2 + $0x1d8] sm:$0xff]
        %v479 = vld [vmem:[#allocation2 + $0x1e0] sm:$0xff]
        %v480 = vld [vmem:[#allocation2 + $0x1e8] sm:$0xff]
        %v481 = vld [vmem:[#allocation2 + $0x1f0] sm:$0xff]
        %v482 = vld [vmem:[#allocation2 + $0x1f8] sm:$0xff]
        %v483 = vld [vmem:[#allocation2 + $0x200] sm:$0xff]
        %v484 = vld [vmem:[#allocation2 + $0x208] sm:$0xff]
        %v485 = vld [vmem:[#allocation2 + $0x210] sm:$0xff]
        %v486 = vld [vmem:[#allocation2 + $0x218] sm:$0xff]
        %v487 = vld [vmem:[#allocation2 + $0x220] sm:$0xff]
        %v488 = vld [vmem:[#allocation2 + $0x228] sm:$0xff]
        %v489 = vld [vmem:[#allocation2 + $0x230] sm:$0xff]
        %v490 = vld [vmem:[#allocation2 + $0x238] sm:$0xff]
        %v491 = vld [vmem:[#allocation2 + $0x240] sm:$0xff]
        %v492 = vld [vmem:[#allocation2 + $0x248] sm:$0xff]
        %v493 = vld [vmem:[#allocation2 + $0x250] sm:$0xff]
        %v494 = vld [vmem:[#allocation2 + $0x258] sm:$0xff]
        %v495 = vld [vmem:[#allocation2 + $0x260] sm:$0xff]
        %v496 = vld [vmem:[#allocation2 + $0x268] sm:$0xff]
        %v497 = vld [vmem:[#allocation2 + $0x270] sm:$0xff]
        %v498 = vld [vmem:[#allocation2 + $0x278] sm:$0xff]
        %v499 = vld [vmem:[#allocation2 + $0x280] sm:$0xff]
        %v500 = vld [vmem:[#allocation2 + $0x288] sm:$0xff]
        %v501 = vld [vmem:[#allocation2 + $0x290] sm:$0xff]
        %v502 = vld [vmem:[#allocation2 + $0x298] sm:$0xff]
        %v503 = vld [vmem:[#allocation2 + $0x2a0] sm:$0xff]
        %v504 = vld [vmem:[#allocation2 + $0x2a8] sm:$0xff]
        %v505 = vld [vmem:[#allocation2 + $0x2b0] sm:$0xff]
        %v506 = vld [vmem:[#allocation2 + $0x2b8] sm:$0xff]
        %v507 = vld [vmem:[#allocation2 + $0x2c0] sm:$0xff]
        %v508 = vld [vmem:[#allocation2 + $0x2c8] sm:$0xff]
        %v509 = vld [vmem:[#allocation2 + $0x2d0] sm:$0xff]
        %v510 = vld [vmem:[#allocation2 + $0x2d8] sm:$0xff]
        %v511 = vld [vmem:[#allocation2 + $0x2e0] sm:$0xff]
        %v512 = vld [vmem:[#allocation2 + $0x2e8] sm:$0xff]
        %v513 = vld [vmem:[#allocation2 + $0x2f0] sm:$0xff]
        %v514 = vld [vmem:[#allocation2 + $0x2f8] sm:$0xff]
        %v515 = vld [vmem:[#allocation2 + $0x300] sm:$0xff]
        %v516 = vld [vmem:[#allocation2 + $0x308] sm:$0xff]
        %v517 = vld [vmem:[#allocation2 + $0x310] sm:$0xff]
        %v518 = vld [vmem:[#allocation2 + $0x318] sm:$0xff]
        %v519 = vld [vmem:[#allocation2 + $0x320] sm:$0xff]
        %v520 = vld [vmem:[#allocation2 + $0x328] sm:$0xff]
        %v521 = vld [vmem:[#allocation2 + $0x330] sm:$0xff]
        %v522 = vld [vmem:[#allocation2 + $0x338] sm:$0xff]
        %v523 = vld [vmem:[#allocation2 + $0x340] sm:$0xff]
        %v524 = vld [vmem:[#allocation2 + $0x348] sm:$0xff]
        %v525 = vld [vmem:[#allocation2 + $0x350] sm:$0xff]
        %v526 = vld [vmem:[#allocation2 + $0x358] sm:$0xff]
        %v527 = vld [vmem:[#allocation2 + $0x360] sm:$0xff]
        %v528 = vld [vmem:[#allocation2 + $0x368] sm:$0xff]
        %v529 = vld [vmem:[#allocation2 + $0x370] sm:$0xff]
        %v530 = vld [vmem:[#allocation2 + $0x378] sm:$0xff]
        %v531 = vld [vmem:[#allocation2 + $0x380] sm:$0xff]
        %v532 = vld [vmem:[#allocation2 + $0x388] sm:$0xff]
        %v533 = vld [vmem:[#allocation2 + $0x390] sm:$0xff]
        %v534 = vld [vmem:[#allocation2 + $0x398] sm:$0xff]
        %v535 = vld [vmem:[#allocation2 + $0x3a0] sm:$0xff]
        %v536 = vld [vmem:[#allocation2 + $0x3a8] sm:$0xff]
        %v537 = vld [vmem:[#allocation2 + $0x3b0] sm:$0xff]
        %v538 = vld [vmem:[#allocation2 + $0x3b8] sm:$0xff]
        %v539 = vld [vmem:[#allocation2 + $0x3c0] sm:$0xff]
        %v540 = vld [vmem:[#allocation2 + $0x3c8] sm:$0xff]
        %v541 = vld [vmem:[#allocation2 + $0x3d0] sm:$0xff]
        %v542 = vld [vmem:[#allocation2 + $0x3d8] sm:$0xff]
        %v543 = vld [vmem:[#allocation2 + $0x3e0] sm:$0xff]
        %v544 = vld [vmem:[#allocation2 + $0x3e8] sm:$0xff]
        %v545 = vld [vmem:[#allocation2 + $0x3f0] sm:$0xff]
        %v546 = vld [vmem:[#allocation2 + $0x3f8] sm:$0xff]
        %v547 = vld [vmem:[%s3] sm:$0xff]
        %v548 = vld [vmem:[%s3 + $0x8] sm:$0xff]
        %v549 = vld [vmem:[%s3 + $0x10] sm:$0xff]
        %v550 = vld [vmem:[%s3 + $0x18] sm:$0xff]
        %v551 = vld [vmem:[%s3 + $0x20] sm:$0xff]
        %v552 = vld [vmem:[%s3 + $0x28] sm:$0xff]
        %v553 = vld [vmem:[%s3 + $0x30] sm:$0xff]
        %v554 = vld [vmem:[%s3 + $0x38] sm:$0xff]
        %v555 = vld [vmem:[%s3 + $0x40] sm:$0xff]
        %v556 = vld [vmem:[%s3 + $0x48] sm:$0xff]
        %v557 = vld [vmem:[%s3 + $0x50] sm:$0xff]
        %v558 = vld [vmem:[%s3 + $0x58] sm:$0xff]
        %v559 = vld [vmem:[%s3 + $0x60] sm:$0xff]
        %v560 = vld [vmem:[%s3 + $0x68] sm:$0xff]
        %v561 = vld [vmem:[%s3 + $0x70] sm:$0xff]
        %v562 = vld [vmem:[%s3 + $0x78] sm:$0xff]
        %v579 = vunpack.c.l.b16 %v547
        %v580 = vunpack.c.h.b16 %v547
        %v581 = vunpack.c.l.b16 %v548
        %v582 = vunpack.c.h.b16 %v548
        %v583 = vunpack.c.l.b16 %v549
        %v584 = vunpack.c.h.b16 %v549
        %v585 = vunpack.c.l.b16 %v550
        %v586 = vunpack.c.h.b16 %v550
        %v587 = vunpack.c.l.b16 %v551
        %v588 = vunpack.c.h.b16 %v551
        %v589 = vunpack.c.l.b16 %v552
        %v590 = vunpack.c.h.b16 %v552
        %v591 = vunpack.c.l.b16 %v553
        %v592 = vunpack.c.h.b16 %v553
        %v593 = vunpack.c.l.b16 %v554
        %v594 = vunpack.c.h.b16 %v554
        %v595 = vunpack.c.l.b16 %v555
        %v596 = vunpack.c.h.b16 %v555
        %v597 = vunpack.c.l.b16 %v556
        %v598 = vunpack.c.h.b16 %v556
        %v599 = vunpack.c.l.b16 %v557
        %v600 = vunpack.c.h.b16 %v557
        %v601 = vunpack.c.l.b16 %v558
        %v602 = vunpack.c.h.b16 %v558
        %v603 = vunpack.c.l.b16 %v559
        %v604 = vunpack.c.h.b16 %v559
        %v605 = vunpack.c.l.b16 %v560
        %v606 = vunpack.c.h.b16 %v560
        %v607 = vunpack.c.l.b16 %v561
        %v608 = vunpack.c.h.b16 %v561
        %v609 = vunpack.c.l.b16 %v562
        %v610 = vunpack.c.h.b16 %v562
        %v611 = vpack.c.b16 %v581, %v579
        %v612 = vpack.c.b16 %v582, %v580
        %v613 = vpack.c.b16 %v585, %v583
        %v614 = vpack.c.b16 %v586, %v584
        %v615 = vpack.c.b16 %v589, %v587
        %v616 = vpack.c.b16 %v590, %v588
        %v617 = vpack.c.b16 %v593, %v591
        %v618 = vpack.c.b16 %v594, %v592
        %v619 = vpack.c.b16 %v597, %v595
        %v620 = vpack.c.b16 %v598, %v596
        %v621 = vpack.c.b16 %v601, %v599
        %v622 = vpack.c.b16 %v602, %v600
        %v623 = vpack.c.b16 %v605, %v603
        %v624 = vpack.c.b16 %v606, %v604
        %v625 = vpack.c.b16 %v609, %v607
        %v626 = vpack.c.b16 %v610, %v608
        %643 = vmatprep.subr.bf16.mxu0 %v626
        %644 = vmatpush1.bf16.msra.mxu0 %v625
        %645 = vmatprep.subr.bf16.mxu0 %v624
        %646 = vmatpush1.bf16.msra.mxu0 %v623
        %647 = vmatprep.subr.bf16.mxu0 %v622
        %648 = vmatpush1.bf16.msra.mxu0 %v621
        %649 = vmatprep.subr.bf16.mxu0 %v620
        %650 = vmatpush1.bf16.msra.mxu0 %v619
        %651 = vmatprep.subr.bf16.mxu0 %v618
        %652 = vmatpush1.bf16.msra.mxu0 %v617
        %653 = vmatprep.subr.bf16.mxu0 %v616
        %654 = vmatpush1.bf16.msra.mxu0 %v615
        %655 = vmatprep.subr.bf16.mxu0 %v614
        %656 = vmatpush1.bf16.msra.mxu0 %v613
        %657 = vmatprep.subr.bf16.mxu0 %v612
        %658 = vmatpush1.bf16.msra.mxu0 %v611
        %659 = vmatprep.subr.bf16.mxu0 0
        %660 = vmatpush2.bf16.msra.mxu0 0
        %661 = vmatprep.subr.bf16.mxu0 0
        %662 = vmatpush2.bf16.msra.mxu0 0
        %663 = vmatprep.subr.bf16.mxu0 0
        %664 = vmatpush2.bf16.msra.mxu0 0
        %665 = vmatprep.subr.bf16.mxu0 0
        %666 = vmatpush2.bf16.msra.mxu0 0
        %667 = vmatprep.subr.bf16.mxu0 0
        %668 = vmatpush2.bf16.msra.mxu0 0
        %669 = vmatprep.subr.bf16.mxu0 0
        %670 = vmatpush2.bf16.msra.mxu0 0
        %671 = vmatprep.subr.bf16.mxu0 0
        %672 = vmatpush2.bf16.msra.mxu0 0
        %673 = vmatprep.subr.bf16.mxu0 0
        %674 = vmatpush2.bf16.msra.mxu0 0
        %675 = vmatprep.mubr.bf16.mxu0 0
        %676 = vmatmul.mubr.bf16.gmra.mxu0 %v418
        %v677 = vpop.f32.mrf.mxu0
        %v678 = vadd.f32 0.0, %v677
        %v679 = vpop.f32.mrf.mxu0
        %v680 = vadd.f32 0.0, %v679
        %v681 = vpop.f32.mrf.mxu0
        %v682 = vadd.f32 0.0, %v681
        %v683 = vpop.f32.mrf.mxu0
        %v684 = vadd.f32 0.0, %v683
        %685 = vdwg.mxu0
        %v814 = vunpack.c.l.b16 %v419
        %v815 = vunpack.c.h.b16 %v419
        %v816 = vunpack.c.l.b16 %v420
        %v817 = vunpack.c.h.b16 %v420
        %v818 = vunpack.c.l.b16 %v421
        %v819 = vunpack.c.h.b16 %v421
        %v820 = vunpack.c.l.b16 %v422
        %v821 = vunpack.c.h.b16 %v422
        %v822 = vunpack.c.l.b16 %v423
        %v823 = vunpack.c.h.b16 %v423
        %v824 = vunpack.c.l.b16 %v424
        %v825 = vunpack.c.h.b16 %v424
        %v826 = vunpack.c.l.b16 %v425
        %v827 = vunpack.c.h.b16 %v425
        %v828 = vunpack.c.l.b16 %v426
        %v829 = vunpack.c.h.b16 %v426
        %v830 = vunpack.c.l.b16 %v427
        %v831 = vunpack.c.h.b16 %v427
        %v832 = vunpack.c.l.b16 %v428
        %v833 = vunpack.c.h.b16 %v428
        %v834 = vunpack.c.l.b16 %v429
        %v835 = vunpack.c.h.b16 %v429
        %v836 = vunpack.c.l.b16 %v430
        %v837 = vunpack.c.h.b16 %v430
        %v838 = vunpack.c.l.b16 %v431
        %v839 = vunpack.c.h.b16 %v431
        %v840 = vunpack.c.l.b16 %v432
        %v841 = vunpack.c.h.b16 %v432
        %v842 = vunpack.c.l.b16 %v433
        %v843 = vunpack.c.h.b16 %v433
        %v844 = vunpack.c.l.b16 %v434
        %v845 = vunpack.c.h.b16 %v434
        %v846 = vunpack.c.l.b16 %v435
        %v847 = vunpack.c.h.b16 %v435
        %v848 = vunpack.c.l.b16 %v436
        %v849 = vunpack.c.h.b16 %v436
        %v850 = vunpack.c.l.b16 %v437
        %v851 = vunpack.c.h.b16 %v437
        %v852 = vunpack.c.l.b16 %v438
        %v853 = vunpack.c.h.b16 %v438
        %v854 = vunpack.c.l.b16 %v439
        %v855 = vunpack.c.h.b16 %v439
        %v856 = vunpack.c.l.b16 %v440
        %v857 = vunpack.c.h.b16 %v440
        %v858 = vunpack.c.l.b16 %v441
        %v859 = vunpack.c.h.b16 %v441
        %v860 = vunpack.c.l.b16 %v442
        %v861 = vunpack.c.h.b16 %v442
        %v862 = vunpack.c.l.b16 %v443
        %v863 = vunpack.c.h.b16 %v443
        %v864 = vunpack.c.l.b16 %v444
        %v865 = vunpack.c.h.b16 %v444
        %v866 = vunpack.c.l.b16 %v445
        %v867 = vunpack.c.h.b16 %v445
        %v868 = vunpack.c.l.b16 %v446
        %v869 = vunpack.c.h.b16 %v446
        %v870 = vunpack.c.l.b16 %v447
        %v871 = vunpack.c.h.b16 %v447
        %v872 = vunpack.c.l.b16 %v448
        %v873 = vunpack.c.h.b16 %v448
        %v874 = vunpack.c.l.b16 %v449
        %v875 = vunpack.c.h.b16 %v449
        %v876 = vunpack.c.l.b16 %v450
        %v877 = vunpack.c.h.b16 %v450
        %v878 = vunpack.c.l.b16 %v451
        %v879 = vunpack.c.h.b16 %v451
        %v880 = vunpack.c.l.b16 %v452
        %v881 = vunpack.c.h.b16 %v452
        %v882 = vunpack.c.l.b16 %v453
        %v883 = vunpack.c.h.b16 %v453
        %v884 = vunpack.c.l.b16 %v454
        %v885 = vunpack.c.h.b16 %v454
        %v886 = vunpack.c.l.b16 %v455
        %v887 = vunpack.c.h.b16 %v455
        %v888 = vunpack.c.l.b16 %v456
        %v889 = vunpack.c.h.b16 %v456
        %v890 = vunpack.c.l.b16 %v457
        %v891 = vunpack.c.h.b16 %v457
        %v892 = vunpack.c.l.b16 %v458
        %v893 = vunpack.c.h.b16 %v458
        %v894 = vunpack.c.l.b16 %v459
        %v895 = vunpack.c.h.b16 %v459
        %v896 = vunpack.c.l.b16 %v460
        %v897 = vunpack.c.h.b16 %v460
        %v898 = vunpack.c.l.b16 %v461
        %v899 = vunpack.c.h.b16 %v461
        %v900 = vunpack.c.l.b16 %v462
        %v901 = vunpack.c.h.b16 %v462
        %v902 = vunpack.c.l.b16 %v463
        %v903 = vunpack.c.h.b16 %v463
        %v904 = vunpack.c.l.b16 %v464
        %v905 = vunpack.c.h.b16 %v464
        %v906 = vunpack.c.l.b16 %v465
        %v907 = vunpack.c.h.b16 %v465
        %v908 = vunpack.c.l.b16 %v466
        %v909 = vunpack.c.h.b16 %v466
        %v910 = vunpack.c.l.b16 %v467
        %v911 = vunpack.c.h.b16 %v467
        %v912 = vunpack.c.l.b16 %v468
        %v913 = vunpack.c.h.b16 %v468
        %v914 = vunpack.c.l.b16 %v469
        %v915 = vunpack.c.h.b16 %v469
        %v916 = vunpack.c.l.b16 %v470
        %v917 = vunpack.c.h.b16 %v470
        %v918 = vunpack.c.l.b16 %v471
        %v919 = vunpack.c.h.b16 %v471
        %v920 = vunpack.c.l.b16 %v472
        %v921 = vunpack.c.h.b16 %v472
        %v922 = vunpack.c.l.b16 %v473
        %v923 = vunpack.c.h.b16 %v473
        %v924 = vunpack.c.l.b16 %v474
        %v925 = vunpack.c.h.b16 %v474
        %v926 = vunpack.c.l.b16 %v475
        %v927 = vunpack.c.h.b16 %v475
        %v928 = vunpack.c.l.b16 %v476
        %v929 = vunpack.c.h.b16 %v476
        %v930 = vunpack.c.l.b16 %v477
        %v931 = vunpack.c.h.b16 %v477
        %v932 = vunpack.c.l.b16 %v478
        %v933 = vunpack.c.h.b16 %v478
        %v934 = vunpack.c.l.b16 %v479
        %v935 = vunpack.c.h.b16 %v479
        %v936 = vunpack.c.l.b16 %v480
        %v937 = vunpack.c.h.b16 %v480
        %v938 = vunpack.c.l.b16 %v481
        %v939 = vunpack.c.h.b16 %v481
        %v940 = vunpack.c.l.b16 %v482
        %v941 = vunpack.c.h.b16 %v482
        %v942 = vunpack.c.l.b16 %v483
        %v943 = vunpack.c.h.b16 %v483
        %v944 = vunpack.c.l.b16 %v484
        %v945 = vunpack.c.h.b16 %v484
        %v946 = vunpack.c.l.b16 %v485
        %v947 = vunpack.c.h.b16 %v485
        %v948 = vunpack.c.l.b16 %v486
        %v949 = vunpack.c.h.b16 %v486
        %v950 = vunpack.c.l.b16 %v487
        %v951 = vunpack.c.h.b16 %v487
        %v952 = vunpack.c.l.b16 %v488
        %v953 = vunpack.c.h.b16 %v488
        %v954 = vunpack.c.l.b16 %v489
        %v955 = vunpack.c.h.b16 %v489
        %v956 = vunpack.c.l.b16 %v490
        %v957 = vunpack.c.h.b16 %v490
        %v958 = vunpack.c.l.b16 %v491
        %v959 = vunpack.c.h.b16 %v491
        %v960 = vunpack.c.l.b16 %v492
        %v961 = vunpack.c.h.b16 %v492
        %v962 = vunpack.c.l.b16 %v493
        %v963 = vunpack.c.h.b16 %v493
        %v964 = vunpack.c.l.b16 %v494
        %v965 = vunpack.c.h.b16 %v494
        %v966 = vunpack.c.l.b16 %v495
        %v967 = vunpack.c.h.b16 %v495
        %v968 = vunpack.c.l.b16 %v496
        %v969 = vunpack.c.h.b16 %v496
        %v970 = vunpack.c.l.b16 %v497
        %v971 = vunpack.c.h.b16 %v497
        %v972 = vunpack.c.l.b16 %v498
        %v973 = vunpack.c.h.b16 %v498
        %v974 = vunpack.c.l.b16 %v499
        %v975 = vunpack.c.h.b16 %v499
        %v976 = vunpack.c.l.b16 %v500
        %v977 = vunpack.c.h.b16 %v500
        %v978 = vunpack.c.l.b16 %v501
        %v979 = vunpack.c.h.b16 %v501
        %v980 = vunpack.c.l.b16 %v502
        %v981 = vunpack.c.h.b16 %v502
        %v982 = vunpack.c.l.b16 %v503
        %v983 = vunpack.c.h.b16 %v503
        %v984 = vunpack.c.l.b16 %v504
        %v985 = vunpack.c.h.b16 %v504
        %v986 = vunpack.c.l.b16 %v505
        %v987 = vunpack.c.h.b16 %v505
        %v988 = vunpack.c.l.b16 %v506
        %v989 = vunpack.c.h.b16 %v506
        %v990 = vunpack.c.l.b16 %v507
        %v991 = vunpack.c.h.b16 %v507
        %v992 = vunpack.c.l.b16 %v508
        %v993 = vunpack.c.h.b16 %v508
        %v994 = vunpack.c.l.b16 %v509
        %v995 = vunpack.c.h.b16 %v509
        %v996 = vunpack.c.l.b16 %v510
        %v997 = vunpack.c.h.b16 %v510
        %v998 = vunpack.c.l.b16 %v511
        %v999 = vunpack.c.h.b16 %v511
        %v1000 = vunpack.c.l.b16 %v512
        %v1001 = vunpack.c.h.b16 %v512
        %v1002 = vunpack.c.l.b16 %v513
        %v1003 = vunpack.c.h.b16 %v513
        %v1004 = vunpack.c.l.b16 %v514
        %v1005 = vunpack.c.h.b16 %v514
        %v1006 = vunpack.c.l.b16 %v515
        %v1007 = vunpack.c.h.b16 %v515
        %v1008 = vunpack.c.l.b16 %v516
        %v1009 = vunpack.c.h.b16 %v516
        %v1010 = vunpack.c.l.b16 %v517
        %v1011 = vunpack.c.h.b16 %v517
        %v1012 = vunpack.c.l.b16 %v518
        %v1013 = vunpack.c.h.b16 %v518
        %v1014 = vunpack.c.l.b16 %v519
        %v1015 = vunpack.c.h.b16 %v519
        %v1016 = vunpack.c.l.b16 %v520
        %v1017 = vunpack.c.h.b16 %v520
        %v1018 = vunpack.c.l.b16 %v521
        %v1019 = vunpack.c.h.b16 %v521
        %v1020 = vunpack.c.l.b16 %v522
        %v1021 = vunpack.c.h.b16 %v522
        %v1022 = vunpack.c.l.b16 %v523
        %v1023 = vunpack.c.h.b16 %v523
        %v1024 = vunpack.c.l.b16 %v524
        %v1025 = vunpack.c.h.b16 %v524
        %v1026 = vunpack.c.l.b16 %v525
        %v1027 = vunpack.c.h.b16 %v525
        %v1028 = vunpack.c.l.b16 %v526
        %v1029 = vunpack.c.h.b16 %v526
        %v1030 = vunpack.c.l.b16 %v527
        %v1031 = vunpack.c.h.b16 %v527
        %v1032 = vunpack.c.l.b16 %v528
        %v1033 = vunpack.c.h.b16 %v528
        %v1034 = vunpack.c.l.b16 %v529
        %v1035 = vunpack.c.h.b16 %v529
        %v1036 = vunpack.c.l.b16 %v530
        %v1037 = vunpack.c.h.b16 %v530
        %v1038 = vunpack.c.l.b16 %v531
        %v1039 = vunpack.c.h.b16 %v531
        %v1040 = vunpack.c.l.b16 %v532
        %v1041 = vunpack.c.h.b16 %v532
        %v1042 = vunpack.c.l.b16 %v533
        %v1043 = vunpack.c.h.b16 %v533
        %v1044 = vunpack.c.l.b16 %v534
        %v1045 = vunpack.c.h.b16 %v534
        %v1046 = vunpack.c.l.b16 %v535
        %v1047 = vunpack.c.h.b16 %v535
        %v1048 = vunpack.c.l.b16 %v536
        %v1049 = vunpack.c.h.b16 %v536
        %v1050 = vunpack.c.l.b16 %v537
        %v1051 = vunpack.c.h.b16 %v537
        %v1052 = vunpack.c.l.b16 %v538
        %v1053 = vunpack.c.h.b16 %v538
        %v1054 = vunpack.c.l.b16 %v539
        %v1055 = vunpack.c.h.b16 %v539
        %v1056 = vunpack.c.l.b16 %v540
        %v1057 = vunpack.c.h.b16 %v540
        %v1058 = vunpack.c.l.b16 %v541
        %v1059 = vunpack.c.h.b16 %v541
        %v1060 = vunpack.c.l.b16 %v542
        %v1061 = vunpack.c.h.b16 %v542
        %v1062 = vunpack.c.l.b16 %v543
        %v1063 = vunpack.c.h.b16 %v543
        %v1064 = vunpack.c.l.b16 %v544
        %v1065 = vunpack.c.h.b16 %v544
        %v1066 = vunpack.c.l.b16 %v545
        %v1067 = vunpack.c.h.b16 %v545
        %v1068 = vunpack.c.l.b16 %v546
        %v1069 = vunpack.c.h.b16 %v546
        %v1070 = vpack.c.b16 %v816, %v814
        %v1071 = vpack.c.b16 %v817, %v815
        %v1072 = vpack.c.b16 %v820, %v818
        %v1073 = vpack.c.b16 %v821, %v819
        %v1074 = vpack.c.b16 %v824, %v822
        %v1075 = vpack.c.b16 %v825, %v823
        %v1076 = vpack.c.b16 %v828, %v826
        %v1077 = vpack.c.b16 %v829, %v827
        %v1078 = vpack.c.b16 %v832, %v830
        %v1079 = vpack.c.b16 %v833, %v831
        %v1080 = vpack.c.b16 %v836, %v834
        %v1081 = vpack.c.b16 %v837, %v835
        %v1082 = vpack.c.b16 %v840, %v838
        %v1083 = vpack.c.b16 %v841, %v839
        %v1084 = vpack.c.b16 %v844, %v842
        %v1085 = vpack.c.b16 %v845, %v843
        %v1086 = vpack.c.b16 %v848, %v846
        %v1087 = vpack.c.b16 %v849, %v847
        %v1088 = vpack.c.b16 %v852, %v850
        %v1089 = vpack.c.b16 %v853, %v851
        %v1090 = vpack.c.b16 %v856, %v854
        %v1091 = vpack.c.b16 %v857, %v855
        %v1092 = vpack.c.b16 %v860, %v858
        %v1093 = vpack.c.b16 %v861, %v859
        %v1094 = vpack.c.b16 %v864, %v862
        %v1095 = vpack.c.b16 %v865, %v863
        %v1096 = vpack.c.b16 %v868, %v866
        %v1097 = vpack.c.b16 %v869, %v867
        %v1098 = vpack.c.b16 %v872, %v870
        %v1099 = vpack.c.b16 %v873, %v871
        %v1100 = vpack.c.b16 %v876, %v874
        %v1101 = vpack.c.b16 %v877, %v875
        %v1102 = vpack.c.b16 %v880, %v878
        %v1103 = vpack.c.b16 %v881, %v879
        %v1104 = vpack.c.b16 %v884, %v882
        %v1105 = vpack.c.b16 %v885, %v883
        %v1106 = vpack.c.b16 %v888, %v886
        %v1107 = vpack.c.b16 %v889, %v887
        %v1108 = vpack.c.b16 %v892, %v890
        %v1109 = vpack.c.b16 %v893, %v891
        %v1110 = vpack.c.b16 %v896, %v894
        %v1111 = vpack.c.b16 %v897, %v895
        %v1112 = vpack.c.b16 %v900, %v898
        %v1113 = vpack.c.b16 %v901, %v899
        %v1114 = vpack.c.b16 %v904, %v902
        %v1115 = vpack.c.b16 %v905, %v903
        %v1116 = vpack.c.b16 %v908, %v906
        %v1117 = vpack.c.b16 %v909, %v907
        %v1118 = vpack.c.b16 %v912, %v910
        %v1119 = vpack.c.b16 %v913, %v911
        %v1120 = vpack.c.b16 %v916, %v914
        %v1121 = vpack.c.b16 %v917, %v915
        %v1122 = vpack.c.b16 %v920, %v918
        %v1123 = vpack.c.b16 %v921, %v919
        %v1124 = vpack.c.b16 %v924, %v922
        %v1125 = vpack.c.b16 %v925, %v923
        %v1126 = vpack.c.b16 %v928, %v926
        %v1127 = vpack.c.b16 %v929, %v927
        %v1128 = vpack.c.b16 %v932, %v930
        %v1129 = vpack.c.b16 %v933, %v931
        %v1130 = vpack.c.b16 %v936, %v934
        %v1131 = vpack.c.b16 %v937, %v935
        %v1132 = vpack.c.b16 %v940, %v938
        %v1133 = vpack.c.b16 %v941, %v939
        %v1134 = vpack.c.b16 %v944, %v942
        %v1135 = vpack.c.b16 %v945, %v943
        %v1136 = vpack.c.b16 %v948, %v946
        %v1137 = vpack.c.b16 %v949, %v947
        %v1138 = vpack.c.b16 %v952, %v950
        %v1139 = vpack.c.b16 %v953, %v951
        %v1140 = vpack.c.b16 %v956, %v954
        %v1141 = vpack.c.b16 %v957, %v955
        %v1142 = vpack.c.b16 %v960, %v958
        %v1143 = vpack.c.b16 %v961, %v959
        %v1144 = vpack.c.b16 %v964, %v962
        %v1145 = vpack.c.b16 %v965, %v963
        %v1146 = vpack.c.b16 %v968, %v966
        %v1147 = vpack.c.b16 %v969, %v967
        %v1148 = vpack.c.b16 %v972, %v970
        %v1149 = vpack.c.b16 %v973, %v971
        %v1150 = vpack.c.b16 %v976, %v974
        %v1151 = vpack.c.b16 %v977, %v975
        %v1152 = vpack.c.b16 %v980, %v978
        %v1153 = vpack.c.b16 %v981, %v979
        %v1154 = vpack.c.b16 %v984, %v982
        %v1155 = vpack.c.b16 %v985, %v983
        %v1156 = vpack.c.b16 %v988, %v986
        %v1157 = vpack.c.b16 %v989, %v987
        %v1158 = vpack.c.b16 %v992, %v990
        %v1159 = vpack.c.b16 %v993, %v991
        %v1160 = vpack.c.b16 %v996, %v994
        %v1161 = vpack.c.b16 %v997, %v995
        %v1162 = vpack.c.b16 %v1000, %v998
        %v1163 = vpack.c.b16 %v1001, %v999
        %v1164 = vpack.c.b16 %v1004, %v1002
        %v1165 = vpack.c.b16 %v1005, %v1003
        %v1166 = vpack.c.b16 %v1008, %v1006
        %v1167 = vpack.c.b16 %v1009, %v1007
        %v1168 = vpack.c.b16 %v1012, %v1010
        %v1169 = vpack.c.b16 %v1013, %v1011
        %v1170 = vpack.c.b16 %v1016, %v1014
        %v1171 = vpack.c.b16 %v1017, %v1015
        %v1172 = vpack.c.b16 %v1020, %v1018
        %v1173 = vpack.c.b16 %v1021, %v1019
        %v1174 = vpack.c.b16 %v1024, %v1022
        %v1175 = vpack.c.b16 %v1025, %v1023
        %v1176 = vpack.c.b16 %v1028, %v1026
        %v1177 = vpack.c.b16 %v1029, %v1027
        %v1178 = vpack.c.b16 %v1032, %v1030
        %v1179 = vpack.c.b16 %v1033, %v1031
        %v1180 = vpack.c.b16 %v1036, %v1034
        %v1181 = vpack.c.b16 %v1037, %v1035
        %v1182 = vpack.c.b16 %v1040, %v1038
        %v1183 = vpack.c.b16 %v1041, %v1039
        %v1184 = vpack.c.b16 %v1044, %v1042
        %v1185 = vpack.c.b16 %v1045, %v1043
        %v1186 = vpack.c.b16 %v1048, %v1046
        %v1187 = vpack.c.b16 %v1049, %v1047
        %v1188 = vpack.c.b16 %v1052, %v1050
        %v1189 = vpack.c.b16 %v1053, %v1051
        %v1190 = vpack.c.b16 %v1056, %v1054
        %v1191 = vpack.c.b16 %v1057, %v1055
        %v1192 = vpack.c.b16 %v1060, %v1058
        %v1193 = vpack.c.b16 %v1061, %v1059
        %v1194 = vpack.c.b16 %v1064, %v1062
        %v1195 = vpack.c.b16 %v1065, %v1063
        %v1196 = vpack.c.b16 %v1068, %v1066
        %v1197 = vpack.c.b16 %v1069, %v1067
        %1326 = vmatprep.subr.bf16.mxu0 %v1085
        %1327 = vmatpush1.bf16.msra.mxu0 %v1084
        %1328 = vmatprep.subr.bf16.mxu0 %v1083
        %1329 = vmatpush1.bf16.msra.mxu0 %v1082
        %1330 = vmatprep.subr.bf16.mxu0 %v1081
        %1331 = vmatpush1.bf16.msra.mxu0 %v1080
        %1332 = vmatprep.subr.bf16.mxu0 %v1079
        %1333 = vmatpush1.bf16.msra.mxu0 %v1078
        %1334 = vmatprep.subr.bf16.mxu0 %v1077
        %1335 = vmatpush1.bf16.msra.mxu0 %v1076
        %1336 = vmatprep.subr.bf16.mxu0 %v1075
        %1337 = vmatpush1.bf16.msra.mxu0 %v1074
        %1338 = vmatprep.subr.bf16.mxu0 %v1073
        %1339 = vmatpush1.bf16.msra.mxu0 %v1072
        %1340 = vmatprep.subr.bf16.mxu0 %v1071
        %1341 = vmatpush1.bf16.msra.mxu0 %v1070
        %1342 = vmatprep.subr.bf16.mxu0 %v1101
        %1343 = vmatpush2.bf16.msra.mxu0 %v1100
        %1344 = vmatprep.subr.bf16.mxu0 %v1099
        %1345 = vmatpush2.bf16.msra.mxu0 %v1098
        %1346 = vmatprep.subr.bf16.mxu0 %v1097
        %1347 = vmatpush2.bf16.msra.mxu0 %v1096
        %1348 = vmatprep.subr.bf16.mxu0 %v1095
        %1349 = vmatpush2.bf16.msra.mxu0 %v1094
        %1350 = vmatprep.subr.bf16.mxu0 %v1093
        %1351 = vmatpush2.bf16.msra.mxu0 %v1092
        %1352 = vmatprep.subr.bf16.mxu0 %v1091
        %1353 = vmatpush2.bf16.msra.mxu0 %v1090
        %1354 = vmatprep.subr.bf16.mxu0 %v1089
        %1355 = vmatpush2.bf16.msra.mxu0 %v1088
        %1356 = vmatprep.subr.bf16.mxu0 %v1087
        %1357 = vmatpush2.bf16.msra.mxu0 %v1086
        %1358 = vmatprep.mubr.bf16.mxu0 %v409
        %1359 = vmatmul.mubr.bf16.gmra.mxu0 %v408
        %v1360 = vpop.f32.mrf.mxu0
        %v1361 = vadd.f32 %v678, %v1360
        %v1362 = vpop.f32.mrf.mxu0
        %v1363 = vadd.f32 %v680, %v1362
        %v1364 = vpop.f32.mrf.mxu0
        %v1365 = vadd.f32 %v682, %v1364
        %v1366 = vpop.f32.mrf.mxu0
        %v1367 = vadd.f32 %v684, %v1366
        %1368 = vdwg.mxu0
        %1369 = vmatprep.subr.bf16.mxu0 %v1117
        %1370 = vmatpush1.bf16.msra.mxu0 %v1116
        %1371 = vmatprep.subr.bf16.mxu0 %v1115
        %1372 = vmatpush1.bf16.msra.mxu0 %v1114
        %1373 = vmatprep.subr.bf16.mxu0 %v1113
        %1374 = vmatpush1.bf16.msra.mxu0 %v1112
        %1375 = vmatprep.subr.bf16.mxu0 %v1111
        %1376 = vmatpush1.bf16.msra.mxu0 %v1110
        %1377 = vmatprep.subr.bf16.mxu0 %v1109
        %1378 = vmatpush1.bf16.msra.mxu0 %v1108
        %1379 = vmatprep.subr.bf16.mxu0 %v1107
        %1380 = vmatpush1.bf16.msra.mxu0 %v1106
        %1381 = vmatprep.subr.bf16.mxu0 %v1105
        %1382 = vmatpush1.bf16.msra.mxu0 %v1104
        %1383 = vmatprep.subr.bf16.mxu0 %v1103
        %1384 = vmatpush1.bf16.msra.mxu0 %v1102
        %1385 = vmatprep.subr.bf16.mxu0 %v1133
        %1386 = vmatpush2.bf16.msra.mxu0 %v1132
        %1387 = vmatprep.subr.bf16.mxu0 %v1131
        %1388 = vmatpush2.bf16.msra.mxu0 %v1130
        %1389 = vmatprep.subr.bf16.mxu0 %v1129
        %1390 = vmatpush2.bf16.msra.mxu0 %v1128
        %1391 = vmatprep.subr.bf16.mxu0 %v1127
        %1392 = vmatpush2.bf16.msra.mxu0 %v1126
        %1393 = vmatprep.subr.bf16.mxu0 %v1125
        %1394 = vmatpush2.bf16.msra.mxu0 %v1124
        %1395 = vmatprep.subr.bf16.mxu0 %v1123
        %1396 = vmatpush2.bf16.msra.mxu0 %v1122
        %1397 = vmatprep.subr.bf16.mxu0 %v1121
        %1398 = vmatpush2.bf16.msra.mxu0 %v1120
        %1399 = vmatprep.subr.bf16.mxu0 %v1119
        %1400 = vmatpush2.bf16.msra.mxu0 %v1118
        %1401 = vmatprep.mubr.bf16.mxu0 %v411
        %1402 = vmatmul.mubr.bf16.gmra.mxu0 %v410
        %v1403 = vpop.f32.mrf.mxu0
        %v1404 = vadd.f32 %v1361, %v1403
        %v1405 = vpop.f32.mrf.mxu0
        %v1406 = vadd.f32 %v1363, %v1405
        %v1407 = vpop.f32.mrf.mxu0
        %v1408 = vadd.f32 %v1365, %v1407
        %v1409 = vpop.f32.mrf.mxu0
        %v1410 = vadd.f32 %v1367, %v1409
        %1411 = vdwg.mxu0
        %1412 = vmatprep.subr.bf16.mxu0 %v1149
        %1413 = vmatpush1.bf16.msra.mxu0 %v1148
        %1414 = vmatprep.subr.bf16.mxu0 %v1147
        %1415 = vmatpush1.bf16.msra.mxu0 %v1146
        %1416 = vmatprep.subr.bf16.mxu0 %v1145
        %1417 = vmatpush1.bf16.msra.mxu0 %v1144
        %1418 = vmatprep.subr.bf16.mxu0 %v1143
        %1419 = vmatpush1.bf16.msra.mxu0 %v1142
        %1420 = vmatprep.subr.bf16.mxu0 %v1141
        %1421 = vmatpush1.bf16.msra.mxu0 %v1140
        %1422 = vmatprep.subr.bf16.mxu0 %v1139
        %1423 = vmatpush1.bf16.msra.mxu0 %v1138
        %1424 = vmatprep.subr.bf16.mxu0 %v1137
        %1425 = vmatpush1.bf16.msra.mxu0 %v1136
        %1426 = vmatprep.subr.bf16.mxu0 %v1135
        %1427 = vmatpush1.bf16.msra.mxu0 %v1134
        %1428 = vmatprep.subr.bf16.mxu0 %v1165
        %1429 = vmatpush2.bf16.msra.mxu0 %v1164
        %1430 = vmatprep.subr.bf16.mxu0 %v1163
        %1431 = vmatpush2.bf16.msra.mxu0 %v1162
        %1432 = vmatprep.subr.bf16.mxu0 %v1161
        %1433 = vmatpush2.bf16.msra.mxu0 %v1160
        %1434 = vmatprep.subr.bf16.mxu0 %v1159
        %1435 = vmatpush2.bf16.msra.mxu0 %v1158
        %1436 = vmatprep.subr.bf16.mxu0 %v1157
        %1437 = vmatpush2.bf16.msra.mxu0 %v1156
        %1438 = vmatprep.subr.bf16.mxu0 %v1155
        %1439 = vmatpush2.bf16.msra.mxu0 %v1154
        %1440 = vmatprep.subr.bf16.mxu0 %v1153
        %1441 = vmatpush2.bf16.msra.mxu0 %v1152
        %1442 = vmatprep.subr.bf16.mxu0 %v1151
        %1443 = vmatpush2.bf16.msra.mxu0 %v1150
        %1444 = vmatprep.mubr.bf16.mxu0 %v413
        %1445 = vmatmul.mubr.bf16.gmra.mxu0 %v412
        %v1446 = vpop.f32.mrf.mxu0
        %v1447 = vadd.f32 %v1404, %v1446
        %v1448 = vpop.f32.mrf.mxu0
        %v1449 = vadd.f32 %v1406, %v1448
        %v1450 = vpop.f32.mrf.mxu0
        %v1451 = vadd.f32 %v1408, %v1450
        %v1452 = vpop.f32.mrf.mxu0
        %v1453 = vadd.f32 %v1410, %v1452
        %1454 = vdwg.mxu0
        %1455 = vmatprep.subr.bf16.mxu0 %v1181
        %1456 = vmatpush1.bf16.msra.mxu0 %v1180
        %1457 = vmatprep.subr.bf16.mxu0 %v1179
        %1458 = vmatpush1.bf16.msra.mxu0 %v1178
        %1459 = vmatprep.subr.bf16.mxu0 %v1177
        %1460 = vmatpush1.bf16.msra.mxu0 %v1176
        %1461 = vmatprep.subr.bf16.mxu0 %v1175
        %1462 = vmatpush1.bf16.msra.mxu0 %v1174
        %1463 = vmatprep.subr.bf16.mxu0 %v1173
        %1464 = vmatpush1.bf16.msra.mxu0 %v1172
        %1465 = vmatprep.subr.bf16.mxu0 %v1171
        %1466 = vmatpush1.bf16.msra.mxu0 %v1170
        %1467 = vmatprep.subr.bf16.mxu0 %v1169
        %1468 = vmatpush1.bf16.msra.mxu0 %v1168
        %1469 = vmatprep.subr.bf16.mxu0 %v1167
        %1470 = vmatpush1.bf16.msra.mxu0 %v1166
        %1471 = vmatprep.subr.bf16.mxu0 %v1197
        %1472 = vmatpush2.bf16.msra.mxu0 %v1196
        %1473 = vmatprep.subr.bf16.mxu0 %v1195
        %1474 = vmatpush2.bf16.msra.mxu0 %v1194
        %1475 = vmatprep.subr.bf16.mxu0 %v1193
        %1476 = vmatpush2.bf16.msra.mxu0 %v1192
        %1477 = vmatprep.subr.bf16.mxu0 %v1191
        %1478 = vmatpush2.bf16.msra.mxu0 %v1190
        %1479 = vmatprep.subr.bf16.mxu0 %v1189
        %1480 = vmatpush2.bf16.msra.mxu0 %v1188
        %1481 = vmatprep.subr.bf16.mxu0 %v1187
        %1482 = vmatpush2.bf16.msra.mxu0 %v1186
        %1483 = vmatprep.subr.bf16.mxu0 %v1185
        %1484 = vmatpush2.bf16.msra.mxu0 %v1184
        %1485 = vmatprep.subr.bf16.mxu0 %v1183
        %1486 = vmatpush2.bf16.msra.mxu0 %v1182
        %1487 = vmatprep.mubr.bf16.mxu0 %v415
        %1488 = vmatmul.mubr.bf16.gmra.mxu0 %v414
        %v1489 = vpop.f32.mrf.mxu0
        %v1490 = vadd.f32 %v1447, %v1489
        %v1491 = vpop.f32.mrf.mxu0
        %v1492 = vadd.f32 %v1449, %v1491
        %v1493 = vpop.f32.mrf.mxu0
        %v1494 = vadd.f32 %v1451, %v1493
        %v1495 = vpop.f32.mrf.mxu0
        %v1496 = vadd.f32 %v1453, %v1495
        %1497 = vdwg.mxu0
        %v1498 = vld [vmem:[%s4] sm:$0x3]
        %v1500 = vlaneseq
        %v1501 = vshrl.u32 %v1500, 7
        %v1502 = vsub.s32 0, %v1501
        %v1503 = vrot.slane %v1498, %v1502
        %v1504 = vlaneseq
        %v1505 = vshrl.u32 %v1504, 7
        %v1506 = vsub.s32 1, %v1505
        %v1507 = vrot.slane %v1498, %v1506
        %v1510 = vadd.f32 %v1490, %v1503
        %v1511 = vadd.f32 %v1492, %v1507
        %v1512 = vadd.f32 %v1494, %v1503
        %v1513 = vadd.f32 %v1496, %v1507
        %v1514 = vmul.f32 %v1510, %v1510
        %v1515 = vmul.f32 %v1511, %v1511
        %v1516 = vmul.f32 %v1512, %v1512
        %v1517 = vmul.f32 %v1513, %v1513
        %v1518 = vmul.f32 %v1510, %v1514
        %v1519 = vmul.f32 %v1511, %v1515
        %v1520 = vmul.f32 %v1512, %v1516
        %v1521 = vmul.f32 %v1513, %v1517
        %v1522 = vmul.f32 %v1518, 0.044715
        %v1523 = vmul.f32 %v1519, 0.044715
        %v1524 = vmul.f32 %v1520, 0.044715
        %v1525 = vmul.f32 %v1521, 0.044715
        %v1526 = vadd.f32 %v1510, %v1522
        %v1527 = vadd.f32 %v1511, %v1523
        %v1528 = vadd.f32 %v1512, %v1524
        %v1529 = vadd.f32 %v1513, %v1525
        %v1530 = vmul.f32 %v1526, 0.7978846
        %v1531 = vmul.f32 %v1527, 0.7978846
        %v1532 = vmul.f32 %v1528, 0.7978846
        %v1533 = vmul.f32 %v1529, 0.7978846
        %v1534 = vtanh.pop %v1530
        %v1535 = vtanh.pop %v1531
        %v1536 = vtanh.pop %v1532
        %v1537 = vtanh.pop %v1533
        %v1538 = vadd.f32 %v1534, 1.0
        %v1539 = vadd.f32 %v1535, 1.0
        %v1540 = vadd.f32 %v1536, 1.0
        %v1541 = vadd.f32 %v1537, 1.0
        %v1542 = vmul.f32 %v1538, 0.5
        %v1543 = vmul.f32 %v1539, 0.5
        %v1544 = vmul.f32 %v1540, 0.5
        %v1545 = vmul.f32 %v1541, 0.5
        %v1546 = vmul.f32 %v1510, %v1542
        %v1547 = vmul.f32 %v1511, %v1543
        %v1548 = vmul.f32 %v1512, %v1544
        %v1549 = vmul.f32 %v1513, %v1545
        %v1550 = vpack.c.bf16 %v1548, %v1546
        %v1551 = vpack.c.bf16 %v1549, %v1547
        %v1552 = vld [vmem:[%s325] sm:$0xff]
        %v1553 = vld [vmem:[%s325 + $0x8] sm:$0xff]
        %v1554 = vld [vmem:[%s325 + $0x10] sm:$0xff]
        %v1555 = vld [vmem:[%s325 + $0x18] sm:$0xff]
        %v1556 = vld [vmem:[%s325 + $0x20] sm:$0xff]
        %v1557 = vld [vmem:[%s325 + $0x28] sm:$0xff]
        %v1558 = vld [vmem:[%s325 + $0x30] sm:$0xff]
        %v1559 = vld [vmem:[%s325 + $0x38] sm:$0xff]
        %v1560 = vld [vmem:[%s325 + $0x40] sm:$0xff]
        %v1561 = vld [vmem:[%s325 + $0x48] sm:$0xff]
        %v1562 = vld [vmem:[%s325 + $0x50] sm:$0xff]
        %v1563 = vld [vmem:[%s325 + $0x58] sm:$0xff]
        %v1564 = vld [vmem:[%s325 + $0x60] sm:$0xff]
        %v1565 = vld [vmem:[%s325 + $0x68] sm:$0xff]
        %v1566 = vld [vmem:[%s325 + $0x70] sm:$0xff]
        %v1567 = vld [vmem:[%s325 + $0x78] sm:$0xff]
        %v1568 = vld [vmem:[%s325 + $0x80] sm:$0xff]
        %v1569 = vld [vmem:[%s325 + $0x88] sm:$0xff]
        %v1570 = vld [vmem:[%s325 + $0x90] sm:$0xff]
        %v1571 = vld [vmem:[%s325 + $0x98] sm:$0xff]
        %v1572 = vld [vmem:[%s325 + $0xa0] sm:$0xff]
        %v1573 = vld [vmem:[%s325 + $0xa8] sm:$0xff]
        %v1574 = vld [vmem:[%s325 + $0xb0] sm:$0xff]
        %v1575 = vld [vmem:[%s325 + $0xb8] sm:$0xff]
        %v1576 = vld [vmem:[%s325 + $0xc0] sm:$0xff]
        %v1577 = vld [vmem:[%s325 + $0xc8] sm:$0xff]
        %v1578 = vld [vmem:[%s325 + $0xd0] sm:$0xff]
        %v1579 = vld [vmem:[%s325 + $0xd8] sm:$0xff]
        %v1580 = vld [vmem:[%s325 + $0xe0] sm:$0xff]
        %v1581 = vld [vmem:[%s325 + $0xe8] sm:$0xff]
        %v1582 = vld [vmem:[%s325 + $0xf0] sm:$0xff]
        %v1583 = vld [vmem:[%s325 + $0xf8] sm:$0xff]
        %v1584 = vld [vmem:[%s325 + $0x100] sm:$0xff]
        %v1585 = vld [vmem:[%s325 + $0x108] sm:$0xff]
        %v1586 = vld [vmem:[%s325 + $0x110] sm:$0xff]
        %v1587 = vld [vmem:[%s325 + $0x118] sm:$0xff]
        %v1588 = vld [vmem:[%s325 + $0x120] sm:$0xff]
        %v1589 = vld [vmem:[%s325 + $0x128] sm:$0xff]
        %v1590 = vld [vmem:[%s325 + $0x130] sm:$0xff]
        %v1591 = vld [vmem:[%s325 + $0x138] sm:$0xff]
        %v1592 = vld [vmem:[%s325 + $0x140] sm:$0xff]
        %v1593 = vld [vmem:[%s325 + $0x148] sm:$0xff]
        %v1594 = vld [vmem:[%s325 + $0x150] sm:$0xff]
        %v1595 = vld [vmem:[%s325 + $0x158] sm:$0xff]
        %v1596 = vld [vmem:[%s325 + $0x160] sm:$0xff]
        %v1597 = vld [vmem:[%s325 + $0x168] sm:$0xff]
        %v1598 = vld [vmem:[%s325 + $0x170] sm:$0xff]
        %v1599 = vld [vmem:[%s325 + $0x178] sm:$0xff]
        %v1600 = vld [vmem:[%s325 + $0x180] sm:$0xff]
        %v1601 = vld [vmem:[%s325 + $0x188] sm:$0xff]
        %v1602 = vld [vmem:[%s325 + $0x190] sm:$0xff]
        %v1603 = vld [vmem:[%s325 + $0x198] sm:$0xff]
        %v1604 = vld [vmem:[%s325 + $0x1a0] sm:$0xff]
        %v1605 = vld [vmem:[%s325 + $0x1a8] sm:$0xff]
        %v1606 = vld [vmem:[%s325 + $0x1b0] sm:$0xff]
        %v1607 = vld [vmem:[%s325 + $0x1b8] sm:$0xff]
        %v1608 = vld [vmem:[%s325 + $0x1c0] sm:$0xff]
        %v1609 = vld [vmem:[%s325 + $0x1c8] sm:$0xff]
        %v1610 = vld [vmem:[%s325 + $0x1d0] sm:$0xff]
        %v1611 = vld [vmem:[%s325 + $0x1d8] sm:$0xff]
        %v1612 = vld [vmem:[%s325 + $0x1e0] sm:$0xff]
        %v1613 = vld [vmem:[%s325 + $0x1e8] sm:$0xff]
        %v1614 = vld [vmem:[%s325 + $0x1f0] sm:$0xff]
        %v1615 = vld [vmem:[%s325 + $0x1f8] sm:$0xff]
        %v1616 = vld [vmem:[%s387] sm:$0xf]
        %v1618 = vlaneseq
        %v1619 = vshrl.u32 %v1618, 7
        %v1620 = vsub.s32 0, %v1619
        %v1621 = vrot.slane %v1616, %v1620
        %v1622 = vlaneseq
        %v1623 = vshrl.u32 %v1622, 7
        %v1624 = vsub.s32 1, %v1623
        %v1625 = vrot.slane %v1616, %v1624
        %v1626 = vlaneseq
        %v1627 = vshrl.u32 %v1626, 7
        %v1628 = vsub.s32 2, %v1627
        %v1629 = vrot.slane %v1616, %v1628
        %v1630 = vlaneseq
        %v1631 = vshrl.u32 %v1630, 7
        %v1632 = vsub.s32 3, %v1631
        %v1633 = vrot.slane %v1616, %v1632
        %v1702 = vunpack.c.l.b16 %v1552
        %v1703 = vunpack.c.h.b16 %v1552
        %v1704 = vunpack.c.l.b16 %v1553
        %v1705 = vunpack.c.h.b16 %v1553
        %v1706 = vunpack.c.l.b16 %v1554
        %v1707 = vunpack.c.h.b16 %v1554
        %v1708 = vunpack.c.l.b16 %v1555
        %v1709 = vunpack.c.h.b16 %v1555
        %v1710 = vunpack.c.l.b16 %v1556
        %v1711 = vunpack.c.h.b16 %v1556
        %v1712 = vunpack.c.l.b16 %v1557
        %v1713 = vunpack.c.h.b16 %v1557
        %v1714 = vunpack.c.l.b16 %v1558
        %v1715 = vunpack.c.h.b16 %v1558
        %v1716 = vunpack.c.l.b16 %v1559
        %v1717 = vunpack.c.h.b16 %v1559
        %v1718 = vunpack.c.l.b16 %v1560
        %v1719 = vunpack.c.h.b16 %v1560
        %v1720 = vunpack.c.l.b16 %v1561
        %v1721 = vunpack.c.h.b16 %v1561
        %v1722 = vunpack.c.l.b16 %v1562
        %v1723 = vunpack.c.h.b16 %v1562
        %v1724 = vunpack.c.l.b16 %v1563
        %v1725 = vunpack.c.h.b16 %v1563
        %v1726 = vunpack.c.l.b16 %v1564
        %v1727 = vunpack.c.h.b16 %v1564
        %v1728 = vunpack.c.l.b16 %v1565
        %v1729 = vunpack.c.h.b16 %v1565
        %v1730 = vunpack.c.l.b16 %v1566
        %v1731 = vunpack.c.h.b16 %v1566
        %v1732 = vunpack.c.l.b16 %v1567
        %v1733 = vunpack.c.h.b16 %v1567
        %v1734 = vunpack.c.l.b16 %v1568
        %v1735 = vunpack.c.h.b16 %v1568
        %v1736 = vunpack.c.l.b16 %v1569
        %v1737 = vunpack.c.h.b16 %v1569
        %v1738 = vunpack.c.l.b16 %v1570
        %v1739 = vunpack.c.h.b16 %v1570
        %v1740 = vunpack.c.l.b16 %v1571
        %v1741 = vunpack.c.h.b16 %v1571
        %v1742 = vunpack.c.l.b16 %v1572
        %v1743 = vunpack.c.h.b16 %v1572
        %v1744 = vunpack.c.l.b16 %v1573
        %v1745 = vunpack.c.h.b16 %v1573
        %v1746 = vunpack.c.l.b16 %v1574
        %v1747 = vunpack.c.h.b16 %v1574
        %v1748 = vunpack.c.l.b16 %v1575
        %v1749 = vunpack.c.h.b16 %v1575
        %v1750 = vunpack.c.l.b16 %v1576
        %v1751 = vunpack.c.h.b16 %v1576
        %v1752 = vunpack.c.l.b16 %v1577
        %v1753 = vunpack.c.h.b16 %v1577
        %v1754 = vunpack.c.l.b16 %v1578
        %v1755 = vunpack.c.h.b16 %v1578
        %v1756 = vunpack.c.l.b16 %v1579
        %v1757 = vunpack.c.h.b16 %v1579
        %v1758 = vunpack.c.l.b16 %v1580
        %v1759 = vunpack.c.h.b16 %v1580
        %v1760 = vunpack.c.l.b16 %v1581
        %v1761 = vunpack.c.h.b16 %v1581
        %v1762 = vunpack.c.l.b16 %v1582
        %v1763 = vunpack.c.h.b16 %v1582
        %v1764 = vunpack.c.l.b16 %v1583
        %v1765 = vunpack.c.h.b16 %v1583
        %v1766 = vunpack.c.l.b16 %v1584
        %v1767 = vunpack.c.h.b16 %v1584
        %v1768 = vunpack.c.l.b16 %v1585
        %v1769 = vunpack.c.h.b16 %v1585
        %v1770 = vunpack.c.l.b16 %v1586
        %v1771 = vunpack.c.h.b16 %v1586
        %v1772 = vunpack.c.l.b16 %v1587
        %v1773 = vunpack.c.h.b16 %v1587
        %v1774 = vunpack.c.l.b16 %v1588
        %v1775 = vunpack.c.h.b16 %v1588
        %v1776 = vunpack.c.l.b16 %v1589
        %v1777 = vunpack.c.h.b16 %v1589
        %v1778 = vunpack.c.l.b16 %v1590
        %v1779 = vunpack.c.h.b16 %v1590
        %v1780 = vunpack.c.l.b16 %v1591
        %v1781 = vunpack.c.h.b16 %v1591
        %v1782 = vunpack.c.l.b16 %v1592
        %v1783 = vunpack.c.h.b16 %v1592
        %v1784 = vunpack.c.l.b16 %v1593
        %v1785 = vunpack.c.h.b16 %v1593
        %v1786 = vunpack.c.l.b16 %v1594
        %v1787 = vunpack.c.h.b16 %v1594
        %v1788 = vunpack.c.l.b16 %v1595
        %v1789 = vunpack.c.h.b16 %v1595
        %v1790 = vunpack.c.l.b16 %v1596
        %v1791 = vunpack.c.h.b16 %v1596
        %v1792 = vunpack.c.l.b16 %v1597
        %v1793 = vunpack.c.h.b16 %v1597
        %v1794 = vunpack.c.l.b16 %v1598
        %v1795 = vunpack.c.h.b16 %v1598
        %v1796 = vunpack.c.l.b16 %v1599
        %v1797 = vunpack.c.h.b16 %v1599
        %v1798 = vunpack.c.l.b16 %v1600
        %v1799 = vunpack.c.h.b16 %v1600
        %v1800 = vunpack.c.l.b16 %v1601
        %v1801 = vunpack.c.h.b16 %v1601
        %v1802 = vunpack.c.l.b16 %v1602
        %v1803 = vunpack.c.h.b16 %v1602
        %v1804 = vunpack.c.l.b16 %v1603
        %v1805 = vunpack.c.h.b16 %v1603
        %v1806 = vunpack.c.l.b16 %v1604
        %v1807 = vunpack.c.h.b16 %v1604
        %v1808 = vunpack.c.l.b16 %v1605
        %v1809 = vunpack.c.h.b16 %v1605
        %v1810 = vunpack.c.l.b16 %v1606
        %v1811 = vunpack.c.h.b16 %v1606
        %v1812 = vunpack.c.l.b16 %v1607
        %v1813 = vunpack.c.h.b16 %v1607
        %v1814 = vunpack.c.l.b16 %v1608
        %v1815 = vunpack.c.h.b16 %v1608
        %v1816 = vunpack.c.l.b16 %v1609
        %v1817 = vunpack.c.h.b16 %v1609
        %v1818 = vunpack.c.l.b16 %v1610
        %v1819 = vunpack.c.h.b16 %v1610
        %v1820 = vunpack.c.l.b16 %v1611
        %v1821 = vunpack.c.h.b16 %v1611
        %v1822 = vunpack.c.l.b16 %v1612
        %v1823 = vunpack.c.h.b16 %v1612
        %v1824 = vunpack.c.l.b16 %v1613
        %v1825 = vunpack.c.h.b16 %v1613
        %v1826 = vunpack.c.l.b16 %v1614
        %v1827 = vunpack.c.h.b16 %v1614
        %v1828 = vunpack.c.l.b16 %v1615
        %v1829 = vunpack.c.h.b16 %v1615
        %v1830 = vpack.c.b16 %v1706, %v1702
        %v1831 = vpack.c.b16 %v1707, %v1703
        %v1832 = vpack.c.b16 %v1708, %v1704
        %v1833 = vpack.c.b16 %v1709, %v1705
        %v1834 = vpack.c.b16 %v1714, %v1710
        %v1835 = vpack.c.b16 %v1715, %v1711
        %v1836 = vpack.c.b16 %v1716, %v1712
        %v1837 = vpack.c.b16 %v1717, %v1713
        %v1838 = vpack.c.b16 %v1722, %v1718
        %v1839 = vpack.c.b16 %v1723, %v1719
        %v1840 = vpack.c.b16 %v1724, %v1720
        %v1841 = vpack.c.b16 %v1725, %v1721
        %v1842 = vpack.c.b16 %v1730, %v1726
        %v1843 = vpack.c.b16 %v1731, %v1727
        %v1844 = vpack.c.b16 %v1732, %v1728
        %v1845 = vpack.c.b16 %v1733, %v1729
        %v1846 = vpack.c.b16 %v1738, %v1734
        %v1847 = vpack.c.b16 %v1739, %v1735
        %v1848 = vpack.c.b16 %v1740, %v1736
        %v1849 = vpack.c.b16 %v1741, %v1737
        %v1850 = vpack.c.b16 %v1746, %v1742
        %v1851 = vpack.c.b16 %v1747, %v1743
        %v1852 = vpack.c.b16 %v1748, %v1744
        %v1853 = vpack.c.b16 %v1749, %v1745
        %v1854 = vpack.c.b16 %v1754, %v1750
        %v1855 = vpack.c.b16 %v1755, %v1751
        %v1856 = vpack.c.b16 %v1756, %v1752
        %v1857 = vpack.c.b16 %v1757, %v1753
        %v1858 = vpack.c.b16 %v1762, %v1758
        %v1859 = vpack.c.b16 %v1763, %v1759
        %v1860 = vpack.c.b16 %v1764, %v1760
        %v1861 = vpack.c.b16 %v1765, %v1761
        %v1862 = vpack.c.b16 %v1770, %v1766
        %v1863 = vpack.c.b16 %v1771, %v1767
        %v1864 = vpack.c.b16 %v1772, %v1768
        %v1865 = vpack.c.b16 %v1773, %v1769
        %v1866 = vpack.c.b16 %v1778, %v1774
        %v1867 = vpack.c.b16 %v1779, %v1775
        %v1868 = vpack.c.b16 %v1780, %v1776
        %v1869 = vpack.c.b16 %v1781, %v1777
        %v1870 = vpack.c.b16 %v1786, %v1782
        %v1871 = vpack.c.b16 %v1787, %v1783
        %v1872 = vpack.c.b16 %v1788, %v1784
        %v1873 = vpack.c.b16 %v1789, %v1785
        %v1874 = vpack.c.b16 %v1794, %v1790
        %v1875 = vpack.c.b16 %v1795, %v1791
        %v1876 = vpack.c.b16 %v1796, %v1792
        %v1877 = vpack.c.b16 %v1797, %v1793
        %v1878 = vpack.c.b16 %v1802, %v1798
        %v1879 = vpack.c.b16 %v1803, %v1799
        %v1880 = vpack.c.b16 %v1804, %v1800
        %v1881 = vpack.c.b16 %v1805, %v1801
        %v1882 = vpack.c.b16 %v1810, %v1806
        %v1883 = vpack.c.b16 %v1811, %v1807
        %v1884 = vpack.c.b16 %v1812, %v1808
        %v1885 = vpack.c.b16 %v1813, %v1809
        %v1886 = vpack.c.b16 %v1818, %v1814
        %v1887 = vpack.c.b16 %v1819, %v1815
        %v1888 = vpack.c.b16 %v1820, %v1816
        %v1889 = vpack.c.b16 %v1821, %v1817
        %v1890 = vpack.c.b16 %v1826, %v1822
        %v1891 = vpack.c.b16 %v1827, %v1823
        %v1892 = vpack.c.b16 %v1828, %v1824
        %v1893 = vpack.c.b16 %v1829, %v1825
        %1958 = vmatprep.subr.bf16.mxu0 %v1859
        %1959 = vmatpush1.bf16.msra.mxu0 %v1858
        %1960 = vmatprep.subr.bf16.mxu0 %v1855
        %1961 = vmatpush1.bf16.msra.mxu0 %v1854
        %1962 = vmatprep.subr.bf16.mxu0 %v1851
        %1963 = vmatpush1.bf16.msra.mxu0 %v1850
        %1964 = vmatprep.subr.bf16.mxu0 %v1847
        %1965 = vmatpush1.bf16.msra.mxu0 %v1846
        %1966 = vmatprep.subr.bf16.mxu0 %v1843
        %1967 = vmatpush1.bf16.msra.mxu0 %v1842
        %1968 = vmatprep.subr.bf16.mxu0 %v1839
        %1969 = vmatpush1.bf16.msra.mxu0 %v1838
        %1970 = vmatprep.subr.bf16.mxu0 %v1835
        %1971 = vmatpush1.bf16.msra.mxu0 %v1834
        %1972 = vmatprep.subr.bf16.mxu0 %v1831
        %1973 = vmatpush1.bf16.msra.mxu0 %v1830
        %1974 = vmatprep.subr.bf16.mxu0 %v1891
        %1975 = vmatpush2.bf16.msra.mxu0 %v1890
        %1976 = vmatprep.subr.bf16.mxu0 %v1887
        %1977 = vmatpush2.bf16.msra.mxu0 %v1886
        %1978 = vmatprep.subr.bf16.mxu0 %v1883
        %1979 = vmatpush2.bf16.msra.mxu0 %v1882
        %1980 = vmatprep.subr.bf16.mxu0 %v1879
        %1981 = vmatpush2.bf16.msra.mxu0 %v1878
        %1982 = vmatprep.subr.bf16.mxu0 %v1875
        %1983 = vmatpush2.bf16.msra.mxu0 %v1874
        %1984 = vmatprep.subr.bf16.mxu0 %v1871
        %1985 = vmatpush2.bf16.msra.mxu0 %v1870
        %1986 = vmatprep.subr.bf16.mxu0 %v1867
        %1987 = vmatpush2.bf16.msra.mxu0 %v1866
        %1988 = vmatprep.subr.bf16.mxu0 %v1863
        %1989 = vmatpush2.bf16.msra.mxu0 %v1862
        %1990 = vmatprep.mubr.bf16.mxu0 %v1551
        %1991 = vmatmul.mubr.bf16.gmra.mxu0 %v1550
        %v1992 = vpop.f32.mrf.mxu0
        %v1993 = vadd.f32 %v1621, %v1992
        %v1994 = vpop.f32.mrf.mxu0
        %v1995 = vadd.f32 %v1625, %v1994
        %v1996 = vpop.f32.mrf.mxu0
        %v1997 = vadd.f32 %v1621, %v1996
        %v1998 = vpop.f32.mrf.mxu0
        %v1999 = vadd.f32 %v1625, %v1998
        %2000 = vdwg.mxu0
        %2001 = vmatprep.subr.bf16.mxu0 %v1861
        %2002 = vmatpush1.bf16.msra.mxu0 %v1860
        %2003 = vmatprep.subr.bf16.mxu0 %v1857
        %2004 = vmatpush1.bf16.msra.mxu0 %v1856
        %2005 = vmatprep.subr.bf16.mxu0 %v1853
        %2006 = vmatpush1.bf16.msra.mxu0 %v1852
        %2007 = vmatprep.subr.bf16.mxu0 %v1849
        %2008 = vmatpush1.bf16.msra.mxu0 %v1848
        %2009 = vmatprep.subr.bf16.mxu0 %v1845
        %2010 = vmatpush1.bf16.msra.mxu0 %v1844
        %2011 = vmatprep.subr.bf16.mxu0 %v1841
        %2012 = vmatpush1.bf16.msra.mxu0 %v1840
        %2013 = vmatprep.subr.bf16.mxu0 %v1837
        %2014 = vmatpush1.bf16.msra.mxu0 %v1836
        %2015 = vmatprep.subr.bf16.mxu0 %v1833
        %2016 = vmatpush1.bf16.msra.mxu0 %v1832
        %2017 = vmatprep.subr.bf16.mxu0 %v1893
        %2018 = vmatpush2.bf16.msra.mxu0 %v1892
        %2019 = vmatprep.subr.bf16.mxu0 %v1889
        %2020 = vmatpush2.bf16.msra.mxu0 %v1888
        %2021 = vmatprep.subr.bf16.mxu0 %v1885
        %2022 = vmatpush2.bf16.msra.mxu0 %v1884
        %2023 = vmatprep.subr.bf16.mxu0 %v1881
        %2024 = vmatpush2.bf16.msra.mxu0 %v1880
        %2025 = vmatprep.subr.bf16.mxu0 %v1877
        %2026 = vmatpush2.bf16.msra.mxu0 %v1876
        %2027 = vmatprep.subr.bf16.mxu0 %v1873
        %2028 = vmatpush2.bf16.msra.mxu0 %v1872
        %2029 = vmatprep.subr.bf16.mxu0 %v1869
        %2030 = vmatpush2.bf16.msra.mxu0 %v1868
        %2031 = vmatprep.subr.bf16.mxu0 %v1865
        %2032 = vmatpush2.bf16.msra.mxu0 %v1864
        %2033 = vmatprep.mubr.bf16.mxu0 %v1551
        %2034 = vmatmul.mubr.bf16.gmra.mxu0 %v1550
        %v2035 = vpop.f32.mrf.mxu0
        %v2036 = vadd.f32 %v1629, %v2035
        %v2037 = vpop.f32.mrf.mxu0
        %v2038 = vadd.f32 %v1633, %v2037
        %v2039 = vpop.f32.mrf.mxu0
        %v2040 = vadd.f32 %v1629, %v2039
        %v2041 = vpop.f32.mrf.mxu0
        %v2042 = vadd.f32 %v1633, %v2041
        %2043 = vdwg.mxu0
        %v2044 = vpack.c.bf16 %v1997, %v1993
        %v2045 = vpack.c.bf16 %v1999, %v1995
        %v2046 = vpack.c.bf16 %v2040, %v2036
        %v2047 = vpack.c.bf16 %v2042, %v2038
        %v2052 = vunpack.c.l.b16 %v2044
        %v2053 = vunpack.c.l.b16 %v2045
        %v2054 = vunpack.c.l.b16 %v2046
        %v2055 = vunpack.c.l.b16 %v2047
        %v2056 = vunpack.c.h.b16 %v2044
        %v2057 = vunpack.c.h.b16 %v2045
        %v2058 = vunpack.c.h.b16 %v2046
        %v2059 = vunpack.c.h.b16 %v2047
        %v2060 = vpack.c.b16 %v2053, %v2052
        %v2061 = vpack.c.b16 %v2055, %v2054
        %v2062 = vpack.c.b16 %v2057, %v2056
        %v2063 = vpack.c.b16 %v2059, %v2058
        %2068 = vst [vmem:[%s369] sm:$0xff] %v2060
        %2069 = vst [vmem:[%s369 + $0x8] sm:$0xff] %v2061
        %2070 = vst [vmem:[%s369 + $0x10] sm:$0xff] %v2062
        %2071 = vst [vmem:[%s369 + $0x18] sm:$0xff] %v2063
        %s2072 = sand.u32 %s211, 1
        %s2073 = sand.u32 %s211, 1
        %s2074 = smul.addr %s2073, 32
        %s2075 = scalar_lea.vmem [#allocation6], %s2074
        // Predicated region
        $region57: #{_call_kernel.1} parent=47 // pred_check
          %p2076 = pneg %p221
        $region58: #{_call_kernel.1} parent=47 // pred_check_branch
          %2078 = sbr.rel (%p2076) target = $region60
        $region59: #{_call_kernel.1} parent=47 // pred_region
          %s2079 = smul.u32 2, %s26
          %s2080 = smul.u32 4, %s27
          %s2081 = smul.addr %s2079, 8
          %s2082 = sadd.s32 %s2080, %s2081
          %s2083 = smul.addr %s2082, 4
          %s2084 = scalar_lea.vmem %s7, %s2083
          // Predicated region
          $region61: #{_call_kernel.1} parent=59 // pred_check
            _
          $region62: #{_call_kernel.1} parent=59 // pred_check_branch
            %2086 = sbr.rel (0) target = $region64
          $region63: #{_call_kernel.1} parent=59 // pred_region
            // Predicated region
            $region65: #{_call_kernel.1} parent=63 // pred_check
              _
            $region66: #{_call_kernel.1} parent=63 // pred_check_branch
              %2088 = sbr.rel (0) target = $region68
            $region67: #{_call_kernel.1} parent=63 // pred_region
              loop: start=0, step=1, limit=1
              $region69: #{_call_kernel.1} parent=67 // loop_pre_header
                _
              $region70: #{_call_kernel.1} parent=67 // loop_header
                %s2090 = sphi 0, %s2094
                %p2091 = scmp.ge.s32.totalorder %s2090, 1
                %s2095 = sphi %s2075, %s2075
                %s2096 = sphi %s2084, %s2084
              $region71: #{_call_kernel.1} parent=67 // loop_header_branch
                %2093 = sbr.rel (%p2091) target = $region75
              $region72: #{_call_kernel.1} parent=67 // loop_body
                %v2097 = vld [vmem:[%s2095] sm:$0xff]
                %2098 = vst [vmem:[%s2096] sm:$0xff] %v2097
                %v2099 = vld [vmem:[%s2095 + $0x8] sm:$0xff]
                %2100 = vst [vmem:[%s2096 + $0x8] sm:$0xff] %v2099
                %v2101 = vld [vmem:[%s2095 + $0x10] sm:$0xff]
                %2102 = vst [vmem:[%s2096 + $0x20] sm:$0xff] %v2101
                %v2103 = vld [vmem:[%s2095 + $0x18] sm:$0xff]
                %2104 = vst [vmem:[%s2096 + $0x28] sm:$0xff] %v2103
              $region73: #{_call_kernel.1} parent=67 // loop_footer
                %s2094 = sadd.s32 1, %s2090
              $region74: #{_call_kernel.1} parent=67 // loop_footer_branch
                %2089 = sbr.rel target = $region70
              $region75: #{_call_kernel.1} parent=67 // loop_exit
                _
            $region68: #{_call_kernel.1} parent=63 // pred_fallthru
              _
            // Predicated region
            $region76: #{_call_kernel.1} parent=63 // pred_check
              _
            $region77: #{_call_kernel.1} parent=63 // pred_check_branch
              %2106 = sbr.rel target = $region79
            $region78: #{_call_kernel.1} parent=63 // pred_region
              _
            $region79: #{_call_kernel.1} parent=63 // pred_fallthru
              _
          $region64: #{_call_kernel.1} parent=59 // pred_fallthru
            _
          %2107 = vnop
        $region60: #{_call_kernel.1} parent=47 // pred_fallthru
          _
      $region48: #{_call_kernel.1} parent=5 // pred_fallthru
        _
      %p2108 = scmp.le.s32.totalorder 2, %s17
      // Predicated region
      $region80: #{_call_kernel.1} parent=5 // pred_check
        %p2109 = pneg %p2108
      $region81: #{_call_kernel.1} parent=5 // pred_check_branch
        %2111 = sbr.rel (%p2109) target = $region83
      $region82: #{_call_kernel.1} parent=5 // pred_region
        %s2112 = ssub.s32 %s17, 2
        // Predicated region
        $region84: #{_call_kernel.1} parent=82 // pred_check
          %p2113 = pneg %p227
        $region85: #{_call_kernel.1} parent=82 // pred_check_branch
          %2115 = sbr.rel (%p2113) target = $region87
        $region86: #{_call_kernel.1} parent=82 // pred_region
          %s2116 = sand.u32 %s212, 1
          %s2117 = sand.u32 %s212, 1
          %s2118 = smul.addr %s2117, 32
          %s2119 = scalar_lea.vmem [#allocation6], %s2118
        $region87: #{_call_kernel.1} parent=82 // pred_fallthru
          _
      $region83: #{_call_kernel.1} parent=5 // pred_fallthru
        _
    $region6: #{_call_kernel.1} parent=1 // loop_footer
      %s21 = sadd.s32 1, %s17
    $region7: #{_call_kernel.1} parent=1 // loop_footer_branch
      %16 = sbr.rel target = $region3
    $region8: #{_call_kernel.1} parent=1 // loop_exit
      _
    %2120 = vsyncpa [#allocation3], 1
    %s2121 = scalar_lea.sflag [#allocation3], 1
    %2122 = vsyncpa %s2121, 1
    %2123 = vsyncpa [#allocation5], 1
    %s2124 = scalar_lea.sflag [#allocation5], 1
    %2125 = vsyncpa %s2124, 1

</llo_original>
